<compile_context>
chip_gen: v6e
topology: v6e:2x2x1
jax: 0.10.0
libtpu: 0.0.40
codegen_flags: <defaults>
</compile_context>

<pallas_src>
import functools

import jax
import jax.numpy as jnp
from jax import lax
from jax.experimental import pallas as pl
from jax.experimental.pallas import tpu as pltpu

EPS = 1e-5  # nn.BatchNorm2d default eps

darknet53 = [(32, 3, 1), (64, 3, 2), ('ResidualBlock', 1), (128, 3, 2),
             ('ResidualBlock', 2), (256, 3, 2), ('ResidualBlock', 8),
             (512, 3, 2), ('ResidualBlock', 8), (1024, 3, 2),
             ('ResidualBlock', 4)]

cfg = [*darknet53, (512, 1, 1), (1024, 3, 1), (512, 1, 1), (1024, 3, 1),
       (512, 1, 1), 'ScaleBlock', (256, 1, 1), 'UpSampleBlock', (256, 1, 1),
       (512, 3, 1), (256, 1, 1), (512, 3, 1), (256, 1, 1), 'ScaleBlock',
       (128, 1, 1), 'UpSampleBlock', (128, 1, 1), (256, 3, 1), (128, 1, 1),
       (256, 3, 1), (128, 1, 1), 'ScaleBlock']

# ------------------------------------------------------------ tiling / VMEM
_BUDGET = 36 * 1024 * 1024     # block-footprint budget (fits v7x 64 MiB VMEM)
_MAX_FUSED_M = 1024            # above this, tile M and use the two-pass BN
_TILE_M = 512                  # M tile for the two-pass path


def _round_up(x, m):
    return (x + m - 1) // m * m


def _est_vmem(tm, kt, tn):
    """Conservative VMEM footprint of one matmul pallas_call (x2 buffers)."""
    return (2 * tm * kt * 2        # patch block, bf16, double buffered
            + 2 * kt * tn * 2      # weight block, bf16
            + 2 * tm * tn * 4      # f32 output block (accumulator)
            + 2 * 8 * tn * 4       # stats side-output block
            + 4 * tn * 4)          # per-channel vectors


def _vmem_limit(est_bytes):
    return int(min(max(est_bytes + (8 << 20), 16 << 20), 56 << 20))


def _pick_kt(tm, K, tn):
    """Largest K tile (multiple of 128, divides K) within the VMEM budget.
    Prefer a single K step so the epilogue fuses with the matmul iteration."""
    if _est_vmem(tm, K, tn) <= _BUDGET:
        return K
    for d in range(2, K // 128 + 1):
        kt = K // d
        if K % d == 0 and kt % 128 == 0 and _est_vmem(tm, kt, tn) <= _BUDGET:
            return kt
    return 128


def _plan(M, K, Cpad):
    """Returns (tm, kt, tn, fused)."""
    tn = min(Cpad, 512)
    fused = M <= _MAX_FUSED_M
    tm = M if fused else _TILE_M
    kt = _pick_kt(tm, K, tn)
    return tm, kt, tn, fused


def _im2col_nhwc(x, kh, kw, stride, padding):
    """x: (N,H,W,C) -> (N*Ho*Wo, kh*kw*C); row packing (i,j,c) matches weights."""
    N, H, W, C = x.shape
    if kh == 1 and kw == 1 and stride == 1 and padding == 0:
        return x.reshape(N * H * W, C), H, W
    xp = jnp.pad(x, ((0, 0), (padding, padding), (padding, padding), (0, 0)))
    Hp, Wp = H + 2 * padding, W + 2 * padding
    Ho = (Hp - kh) // stride + 1
    Wo = (Wp - kw) // stride + 1
    cols = []
    for i in range(kh):
        for j in range(kw):
            cols.append(xp[:,
                           i:i + (Ho - 1) * stride + 1:stride,
                           j:j + (Wo - 1) * stride + 1:stride, :])
    p = jnp.stack(cols, axis=3)                    # (N, Ho, Wo, kh*kw, C)
    return p.reshape(N * Ho * Wo, kh * kw * C), Ho, Wo


# ------------------------------------------------------------- Pallas kernels
def _convbn_fused_kernel(p_ref, w_ref, g_ref, be_ref, o_ref):
    """Matmul + BatchNorm(batch stats over the full, single M tile) + LeakyReLU.

    Grid = (1 [M], Cout tiles, K steps).  BN stats are per-channel, so tiling
    Cout keeps them exact; M must be a single resident tile on this path.
    """
    k = pl.program_id(2)

    @pl.when(k == 0)
    def _():
        o_ref[...] = jnp.zeros_like(o_ref)

    o_ref[...] += jnp.dot(p_ref[...], w_ref[...],
                          preferred_element_type=jnp.float32)

    @pl.when(k == pl.num_programs(2) - 1)
    def _():
        x = o_ref[...]                                        # (M, tn) f32
        m = x.shape[0]
        mean = jnp.sum(x, axis=0, keepdims=True) / m
        var = jnp.maximum(
            jnp.sum(x * x, axis=0, keepdims=True) / m - mean * mean, 0.0)
        scale = g_ref[...] * lax.rsqrt(var + EPS)
        shift = be_ref[...] - mean * scale
        y = x * scale + shift
        o_ref[...] = jnp.maximum(y, 0.1 * y)                  # LeakyReLU(0.1)


def _conv_stats_kernel(p_ref, w_ref, o_ref, st_ref):
    """Matmul producing raw conv output + per-(M-tile, channel) sum / sumsq.

    Grid = (M tiles, Cout tiles, K steps).  BN normalize happens in a second
    pass once the tiny stats have been reduced over M tiles in JAX.
    """
    k = pl.program_id(2)

    @pl.when(k == 0)
    def _():
        o_ref[...] = jnp.zeros_like(o_ref)

    o_ref[...] += jnp.dot(p_ref[...], w_ref[...],
                          preferred_element_type=jnp.float32)

    @pl.when(k == pl.num_programs(2) - 1)
    def _():
        x = o_ref[...]                                        # (tm, tn) f32
        s = jnp.sum(x, axis=0, keepdims=True)                 # (1, tn)
        ss = jnp.sum(x * x, axis=0, keepdims=True)            # (1, tn)
        rows = lax.broadcasted_iota(jnp.int32, (8, x.shape[1]), 0)
        st_ref[...] = jnp.where(rows == 0, s, jnp.where(rows == 1, ss, 0.0))


def _conv_bias_kernel(p_ref, w_ref, b_ref, o_ref):
    """Plain conv (matmul + bias) — ScaleBlock's final 1x1 detection conv."""
    k = pl.program_id(2)

    @pl.when(k == 0)
    def _():
        o_ref[...] = jnp.zeros_like(o_ref)

    o_ref[...] += jnp.dot(p_ref[...], w_ref[...],
                          preferred_element_type=jnp.float32)

    @pl.when(k == pl.num_programs(2) - 1)
    def _():
        o_ref[...] = o_ref[...] + b_ref[...]


def _bn_lrelu_kernel(y_ref, sc_ref, sh_ref, o_ref):
    """Second pass of the M-tiled path: y*scale + shift, LeakyReLU, bf16 out."""
    y = y_ref[...] * sc_ref[...] + sh_ref[...]
    o_ref[...] = jnp.maximum(y, 0.1 * y).astype(o_ref.dtype)


# -------------------------------------------------------- pallas_call wrappers
def _mm_call(kernel, patches, w, vecs, *, tm, kt, tn, with_stats=False):
    """Tiled im2col matmul.  Grid = (M tiles, Cout tiles, K steps); the K
    reduction is last and the f32 output block is the accumulator.  Both M and
    Cout axes are 'parallel' so v7x's two TensorCores get work even when one
    axis has a single tile."""
    Mp, K = patches.shape
    Cp = w.shape[1]
    grid = (Mp // tm, Cp // tn, K // kt)
    in_specs = [pl.BlockSpec((tm, kt), lambda m, n, k: (m, k)),
                pl.BlockSpec((kt, tn), lambda m, n, k: (k, n))]
    in_specs += [pl.BlockSpec((1, tn), lambda m, n, k: (0, n)) for _ in vecs]
    if with_stats:
        out_shape = (jax.ShapeDtypeStruct((Mp, Cp), jnp.float32),
                     jax.ShapeDtypeStruct((grid[0] * 8, Cp), jnp.float32))
        out_specs = (pl.BlockSpec((tm, tn), lambda m, n, k: (m, n)),
                     pl.BlockSpec((8, tn), lambda m, n, k: (m, n)))
    else:
        out_shape = jax.ShapeDtypeStruct((Mp, Cp), jnp.float32)
        out_specs = pl.BlockSpec((tm, tn), lambda m, n, k: (m, n))
    return pl.pallas_call(
        kernel,
        out_shape=out_shape,
        grid_spec=pltpu.PrefetchScalarGridSpec(
            num_scalar_prefetch=0,
            grid=grid,
            in_specs=in_specs,
            out_specs=out_specs),
        compiler_params=pltpu.CompilerParams(
            dimension_semantics=("parallel", "parallel", "arbitrary"),
            vmem_limit_bytes=_vmem_limit(_est_vmem(tm, kt, tn))),
    )(patches, w, *vecs)


def _bn_lrelu_call(y, scale, shift, *, tm):
    Mp, Cp = y.shape
    est = 2 * (tm * Cp * 4 + tm * Cp * 2 + 2 * Cp * 4)
    return pl.pallas_call(
        _bn_lrelu_kernel,
        out_shape=jax.ShapeDtypeStruct((Mp, Cp), jnp.bfloat16),
        grid_spec=pltpu.PrefetchScalarGridSpec(
            num_scalar_prefetch=0,
            grid=(Mp // tm,),
            in_specs=[pl.BlockSpec((tm, Cp), lambda m: (m, 0)),
                      pl.BlockSpec((1, Cp), lambda m: (0, 0)),
                      pl.BlockSpec((1, Cp), lambda m: (0, 0))],
            out_specs=pl.BlockSpec((tm, Cp), lambda m: (m, 0))),
        compiler_params=pltpu.CompilerParams(
            dimension_semantics=("parallel",),
            vmem_limit_bytes=_vmem_limit(est)),
    )(y, scale, shift)


# ------------------------------------------------------------- layer wrappers
@functools.partial(jax.jit, static_argnames=("ks", "stride", "pad", "cout"))
def _conv_block_impl(x, w2, gamma, beta, *, ks, stride, pad, cout):
    """ConvBlock: Conv2d -> BatchNorm2d(batch stats) -> LeakyReLU(0.1).
    NHWC in, NHWC bf16 out."""
    N = x.shape[0]
    x = x.astype(jnp.bfloat16)                     # bf16 MXU inputs, f32 accum
    patches, Ho, Wo = _im2col_nhwc(x, ks, ks, stride, pad)
    M, K = patches.shape
    Kw, Cpad = w2.shape
    if Kw != K:                                    # only the tiny-K layers pad
        patches = jnp.pad(patches, ((0, 0), (0, Kw - K)))
        K = Kw
    tm, kt, tn, fused = _plan(M, K, Cpad)

    if fused:
        # Small M: single resident M tile, BN + LeakyReLU fused in the epilogue.
        out = _mm_call(_convbn_fused_kernel, patches, w2, (gamma, beta),
                       tm=tm, kt=kt, tn=tn)
        if Cpad != cout:
            out = out[:, :cout]
        return out.astype(jnp.bfloat16).reshape(N, Ho, Wo, cout)

    # Large M: M-tiled matmul with per-tile sum/sumsq side outputs, stats
    # reduced in JAX (tiny), then a second Pallas pass for BN + LeakyReLU.
    Mp = _round_up(M, tm)
    if Mp != M:
        patches = jnp.pad(patches, ((0, Mp - M), (0, 0)))   # zero rows: no-op in stats
    y, stats = _mm_call(_conv_stats_kernel, patches, w2, (),
                        tm=tm, kt=kt, tn=tn, with_stats=True)
    nmt = Mp // tm
    stats = stats.reshape(nmt, 8, Cpad)
    s = jnp.sum(stats[:, 0, :], axis=0)
    ss = jnp.sum(stats[:, 1, :], axis=0)
    mean = s / M
    # TODO(synk): E[x^2]-mean^2 in f32 (clamped); a shifted stats pass would be
    # more robust if activations ever get mean >> std.
    var = jnp.maximum(ss / M - mean * mean, 0.0)
    inv = lax.rsqrt(var + EPS)
    g = gamma[0]
    scale = (g * inv).reshape(1, Cpad)
    shift = (beta[0] - mean * g * inv).reshape(1, Cpad)
    out = _bn_lrelu_call(y, scale, shift, tm=tm)             # (Mp, Cpad) bf16
    out = out[:M, :cout]
    return out.reshape(N, Ho, Wo, cout)


@jax.jit
def _head_conv_impl(x, w2, bias):
    """ScaleBlock head: 1x1 Conv2d with bias; Cout padded to 128 (lane-dense)."""
    N, H, W, C = x.shape
    M = N * H * W
    patches = x.astype(jnp.bfloat16).reshape(M, C)
    Kw, Cpad = w2.shape
    if Kw != C:
        patches = jnp.pad(patches, ((0, 0), (0, Kw - C)))
    tn = min(Cpad, 512)
    tm = M if M <= _MAX_FUSED_M else _TILE_M
    Mp = _round_up(M, tm)
    if Mp != M:
        patches = jnp.pad(patches, ((0, Mp - M), (0, 0)))
    kt = _pick_kt(tm, Kw, tn)
    out = _mm_call(_conv_bias_kernel, patches, w2, (bias,), tm=tm, kt=kt, tn=tn)
    return out[:M, :15].reshape(N, H, W, 15)       # 5 * 3 detection values


# ------------------------------------------------------------ parameter prep
def _prep_weight(w):
    """(Cout, Cin, kh, kw) f32 -> bf16 (Kpad, Cpad) matching (i,j,c) im2col rows."""
    cout, cin, kh, kw = w.shape
    K = cin * kh * kw
    Kp = _round_up(K, 128)
    Cp = _round_up(cout, 128)
    w2 = w.transpose(2, 3, 1, 0).reshape(K, cout)
    w2 = jnp.pad(w2, ((0, Kp - K), (0, Cp - cout)))
    return w2.astype(jnp.bfloat16), Cp


def _pad_vec(v, Cp):
    v = v.reshape(1, -1).astype(jnp.float32)
    return jnp.pad(v, ((0, 0), (0, Cp - v.shape[1])))


def init_conv_w(key, cin, cout, k):
    fan_in = cin * k * k
    return jax.random.normal(key, (cout, cin, k, k), jnp.float32) / jnp.sqrt(fan_in)


def init_conv(key, cin, cout, k):
    k1, k2 = jax.random.split(key)
    w = init_conv_w(k1, cin, cout, k)
    b = jax.random.normal(k2, (cout,), jnp.float32) * 0.01
    return w, b


def build_yolov3(key, in_channels=3, num_classes=1):
    layers = []
    c = in_channels
    keys = iter(jax.random.split(key, 256))

    def make_convblock(cin, cout, ks, stride):
        # nn.Conv2d bias intentionally dropped: a per-channel constant added
        # before training-mode BatchNorm cancels exactly in mean/variance.
        w = init_conv_w(next(keys), cin, cout, ks)
        w2, Cp = _prep_weight(w)
        return dict(w=w2,
                    g=_pad_vec(jnp.ones((cout,), jnp.float32), Cp),
                    b=_pad_vec(jnp.zeros((cout,), jnp.float32), Cp),
                    ks=ks, stride=stride, pad=1 if ks == 3 else 0, cout=cout)

    for item in cfg:
        if isinstance(item, tuple):
            if item[0] != 'ResidualBlock':
                cout, ks, stride = item
                blk = make_convblock(c, cout, ks, stride)
                blk['kind'] = 'conv'
                layers.append(blk)
                c = cout
            else:
                reps = item[1]
                blocks = []
                for _ in range(reps):
                    blocks.append((make_convblock(c, c // 2, 1, 1),
                                   make_convblock(c // 2, c, 3, 1)))
                layers.append(dict(kind='residual', blocks=blocks,
                                   num_repeats=reps))
        elif item == 'ScaleBlock':
            cb = make_convblock(c, c * 2, 3, 1)
            w, b = init_conv(next(keys), c * 2, 5 * 3, 1)
            w2, Cp = _prep_weight(w)
            layers.append(dict(kind='scale', cb=cb, w=w2, bias=_pad_vec(b, Cp)))
        elif item == 'UpSampleBlock':
            layers.append(dict(kind='upsample'))
            c *= 3
    return layers


# -------------------------------------------------------------------- forward
def _conv_block(blk, x):
    return _conv_block_impl(x, blk['w'], blk['g'], blk['b'],
                            ks=blk['ks'], stride=blk['stride'],
                            pad=blk['pad'], cout=blk['cout'])


def yolov3_forward(layers, x_nchw):
    x = jnp.transpose(x_nchw, (0, 2, 3, 1))        # NCHW -> NHWC once
    out = []
    routes = []
    for layer in layers:
        kind = layer['kind']
        if kind == 'scale':
            y = _conv_block(layer['cb'], x)
            y = _head_conv_impl(y, layer['w'], layer['bias'])   # (N,H,W,15)
            N, H, W, _ = y.shape
            # NCHW reshape(N,3,5,H,W).permute(0,1,3,4,2) == this NHWC path
            out.append(y.reshape(N, H, W, 3, 5).transpose(0, 3, 1, 2, 4))
            continue
        if kind == 'conv':
            x = _conv_block(layer, x)
        elif kind == 'residual':
            # NOTE: the reference ResidualBlock has no skip-add; it is a plain
            # sequential 1x1 -> 3x3 ConvBlock chain.
            # TODO(synk): fuse each 1x1->3x3 pair into one kernel to drop one
            # HBM round trip of the intermediate per repeat.
            for b1, b2 in layer['blocks']:
                x = _conv_block(b1, x)
                x = _conv_block(b2, x)
            if layer['num_repeats'] == 8:
                routes.append(x)
        elif kind == 'upsample':
            # nn.Upsample(scale_factor=2, mode='nearest') then cat on channels
            x = jnp.repeat(jnp.repeat(x, 2, axis=1), 2, axis=2)
            x = jnp.concatenate((x, routes[-1]), axis=-1)
            routes.pop()
    return out


# ----------------------------------------------------------------------- main
if __name__ == "__main__":
    key = jax.random.PRNGKey(0)
    k_param, k_input = jax.random.split(key)

    # smallest spatial size compatible with the 5 stride-2 stages: 32x32
    x = jax.random.normal(k_input, (2, 3, 32, 32), jnp.float32)

    layers = build_yolov3(k_param, in_channels=3, num_classes=1)
    outs = yolov3_forward(layers, x)

    for o in outs:
        jax.block_until_ready(o)

    # expected output shapes: (2,3,1,1,5), (2,3,2,2,5), (2,3,4,4,5)
    assert outs[0].shape == (2, 3, 1, 1, 5)
    assert outs[1].shape == (2, 3, 2, 2, 5)
    assert outs[2].shape == (2, 3, 4, 4, 5)
    for o in outs:
        assert bool(jnp.all(jnp.isfinite(o.astype(jnp.float32))))

    print("KERNEL_OK")
</pallas_src>

<mosaic_0001>
module attributes {stable_mosaic.version = 11 : i64} {
  func.func @_conv_stats_kernel(%arg0: i32, %arg1: i32, %arg2: i32, %arg3: memref<512x128xbf16, #tpu.memory_space<vmem>>, %arg4: memref<128x128xbf16, #tpu.memory_space<vmem>>, %arg5: memref<512x128xf32, #tpu.memory_space<vmem>>, %arg6: memref<8x128xf32, #tpu.memory_space<vmem>>) attributes {dimension_semantics = [#tpu.dimension_semantics<parallel>, #tpu.dimension_semantics<parallel>, #tpu.dimension_semantics<arbitrary>], iteration_bounds = array<i64: 4, 1, 1>, scalar_prefetch = 0 : i64, scratch_operands = 0 : i64, tpu.core_type = #tpu.core_type<tc>, window_params = [{transform_indices = @transform_0, window_bounds = array<i64: 512, 128>}, {transform_indices = @transform_1, window_bounds = array<i64: 128, 128>}, {transform_indices = @transform_2, window_bounds = array<i64: 512, 128>}, {transform_indices = @transform_3, window_bounds = array<i64: 8, 128>}]} {
    %c0_i32 = arith.constant 0 : i32
    %0 = arith.cmpi eq, %arg2, %c0_i32 : i32
    %1 = arith.extui %0 : i1 to i32
    %c0_i32_0 = arith.constant 0 : i32
    %2 = arith.cmpi ne, %1, %c0_i32_0 : i32
    scf.if %2 {
      %cst_10 = arith.constant 0.000000e+00 : f32
      %12 = vector.broadcast %cst_10 : f32 to vector<512x128xf32>
      %c0_11 = arith.constant 0 : index
      %c0_12 = arith.constant 0 : index
      %13 = vector.load %arg5[%c0_11, %c0_12] : memref<512x128xf32, #tpu.memory_space<vmem>>, vector<512x128xf32>
      tpu.vector_store %arg5[%c0_11, %c0_12], %12 {strides = array<i32>} : memref<512x128xf32, #tpu.memory_space<vmem>>, vector<512x128xf32>,
    } else {
    }
    %c0 = arith.constant 0 : index
    %c0_1 = arith.constant 0 : index
    %3 = vector.load %arg5[%c0, %c0_1] : memref<512x128xf32, #tpu.memory_space<vmem>>, vector<512x128xf32>
    %c0_2 = arith.constant 0 : index
    %c0_3 = arith.constant 0 : index
    %4 = vector.load %arg3[%c0_2, %c0_3] : memref<512x128xbf16, #tpu.memory_space<vmem>>, vector<512x128xbf16>
    %c0_4 = arith.constant 0 : index
    %c0_5 = arith.constant 0 : index
    %5 = vector.load %arg4[%c0_4, %c0_5] : memref<128x128xbf16, #tpu.memory_space<vmem>>, vector<128x128xbf16>
    %cst = arith.constant dense<0.000000e+00> : vector<512x128xf32>
    %6 = tpu.matmul %4, %5, %cst {dimension_numbers = #tpu.dot_dimension_numbers<[1], [0], [0], [1], [0, 0, 1, 1], [], []>} : vector<512x128xbf16>, vector<128x128xbf16>, vector<512x128xf32> -> vector<512x128xf32>
    %7 = arith.addf %3, %6 : vector<512x128xf32>
    %c0_6 = arith.constant 0 : index
    %c0_7 = arith.constant 0 : index
    %8 = vector.load %arg5[%c0_6, %c0_7] : memref<512x128xf32, #tpu.memory_space<vmem>>, vector<512x128xf32>
    tpu.vector_store %arg5[%c0_6, %c0_7], %7 {strides = array<i32>} : memref<512x128xf32, #tpu.memory_space<vmem>>, vector<512x128xf32>,
    %c0_i32_8 = arith.constant 0 : i32
    %9 = arith.cmpi eq, %arg2, %c0_i32_8 : i32
    %10 = arith.extui %9 : i1 to i32
    %c0_i32_9 = arith.constant 0 : i32
    %11 = arith.cmpi ne, %10, %c0_i32_9 : i32
    scf.if %11 {
      %c0_10 = arith.constant 0 : index
      %c0_11 = arith.constant 0 : index
      %12 = vector.load %arg5[%c0_10, %c0_11] : memref<512x128xf32, #tpu.memory_space<vmem>>, vector<512x128xf32>
      %cst_12 = arith.constant dense<0.000000e+00> : vector<128xf32>
      %13 = vector.multi_reduction <add>, %12, %cst_12 [0] : vector<512x128xf32> to vector<128xf32>
      %14 = vector.shape_cast %13 : vector<128xf32> to vector<1x128xf32>
      %15 = arith.mulf %12, %12 : vector<512x128xf32>
      %cst_13 = arith.constant dense<0.000000e+00> : vector<128xf32>
      %16 = vector.multi_reduction <add>, %15, %cst_13 [0] : vector<512x128xf32> to vector<128xf32>
      %17 = vector.shape_cast %16 : vector<128xf32> to vector<1x128xf32>
      %18 = tpu.iota {dimensions = array<i32: 0>} : vector<8x128xi32>
      %c0_i32_14 = arith.constant 0 : i32
      %19 = vector.broadcast %c0_i32_14 : i32 to vector<8x128xi32>
      %20 = arith.cmpi eq, %18, %19 : vector<8x128xi32>
      %c1_i32 = arith.constant 1 : i32
      %21 = vector.broadcast %c1_i32 : i32 to vector<8x128xi32>
      %22 = arith.cmpi eq, %18, %21 : vector<8x128xi32>
      %cst_15 = arith.constant 0.000000e+00 : f32
      %23 = vector.shape_cast %17 : vector<1x128xf32> to vector<1x128xf32>
      %24 = vector.broadcast %23 : vector<1x128xf32> to vector<8x128xf32>
      %25 = vector.broadcast %cst_15 : f32 to vector<8x128xf32>
      %26 = arith.select %22, %24, %25 : vector<8x128xi1>, vector<8x128xf32>
      %27 = vector.shape_cast %14 : vector<1x128xf32> to vector<1x128xf32>
      %28 = vector.broadcast %27 : vector<1x128xf32> to vector<8x128xf32>
      %29 = arith.select %20, %28, %26 : vector<8x128xi1>, vector<8x128xf32>
      %c0_16 = arith.constant 0 : index
      %c0_17 = arith.constant 0 : index
      %30 = vector.load %arg6[%c0_16, %c0_17] : memref<8x128xf32, #tpu.memory_space<vmem>>, vector<8x128xf32>
      tpu.vector_store %arg6[%c0_16, %c0_17], %29 {strides = array<i32>} : memref<8x128xf32, #tpu.memory_space<vmem>>, vector<8x128xf32>,
    } else {
    }
    return
  }
  func.func @transform_0(%arg0: i32, %arg1: i32, %arg2: i32) -> (i32, i32) {
    %c0_i32 = arith.constant 0 : i32
    return %arg0, %arg2 : i32, i32
  }
  func.func @transform_1(%arg0: i32, %arg1: i32, %arg2: i32) -> (i32, i32) {
    %c0_i32 = arith.constant 0 : i32
    return %arg2, %arg1 : i32, i32
  }
  func.func @transform_2(%arg0: i32, %arg1: i32, %arg2: i32) -> (i32, i32) {
    %c0_i32 = arith.constant 0 : i32
    return %arg0, %arg1 : i32, i32
  }
  func.func @transform_3(%arg0: i32, %arg1: i32, %arg2: i32) -> (i32, i32) {
    %c0_i32 = arith.constant 0 : i32
    return %arg0, %arg1 : i32, i32
  }
}

module attributes {stable_mosaic.version = 11 : i64} {
  func.func @_bn_lrelu_kernel(%arg0: i32, %arg1: memref<512x128xf32, #tpu.memory_space<vmem>>, %arg2: memref<1x128xf32, #tpu.memory_space<vmem>>, %arg3: memref<1x128xf32, #tpu.memory_space<vmem>>, %arg4: memref<512x128xbf16, #tpu.memory_space<vmem>>) attributes {dimension_semantics = [#tpu.dimension_semantics<parallel>], iteration_bounds = array<i64: 4>, scalar_prefetch = 0 : i64, scratch_operands = 0 : i64, tpu.core_type = #tpu.core_type<tc>, window_params = [{transform_indices = @transform_0, window_bounds = array<i64: 512, 128>}, {pipeline_mode = #tpu.pipeline_mode<synchronous>, transform_indices = @transform_1, window_bounds = array<i64: 1, 128>}, {pipeline_mode = #tpu.pipeline_mode<synchronous>, transform_indices = @transform_2, window_bounds = array<i64: 1, 128>}, {transform_indices = @transform_3, window_bounds = array<i64: 512, 128>}]} {
    %c0 = arith.constant 0 : index
    %c0_0 = arith.constant 0 : index
    %0 = vector.load %arg1[%c0, %c0_0] : memref<512x128xf32, #tpu.memory_space<vmem>>, vector<512x128xf32>
    %c0_1 = arith.constant 0 : index
    %c0_2 = arith.constant 0 : index
    %1 = vector.load %arg2[%c0_1, %c0_2] : memref<1x128xf32, #tpu.memory_space<vmem>>, vector<1x128xf32>
    %2 = vector.broadcast %1 : vector<1x128xf32> to vector<512x128xf32>
    %3 = arith.mulf %0, %2 : vector<512x128xf32>
    %c0_3 = arith.constant 0 : index
    %c0_4 = arith.constant 0 : index
    %4 = vector.load %arg3[%c0_3, %c0_4] : memref<1x128xf32, #tpu.memory_space<vmem>>, vector<1x128xf32>
    %5 = vector.broadcast %4 : vector<1x128xf32> to vector<512x128xf32>
    %6 = arith.addf %3, %5 : vector<512x128xf32>
    %cst = arith.constant 1.000000e-01 : f32
    %7 = vector.broadcast %cst : f32 to vector<512x128xf32>
    %8 = arith.mulf %7, %6 : vector<512x128xf32>
    %9 = arith.maximumf %6, %8 : vector<512x128xf32>
    %10 = arith.truncf %9 : vector<512x128xf32> to vector<512x128xbf16>
    %c0_5 = arith.constant 0 : index
    %c0_6 = arith.constant 0 : index
    %11 = vector.load %arg4[%c0_5, %c0_6] : memref<512x128xbf16, #tpu.memory_space<vmem>>, vector<512x128xbf16>
    tpu.vector_store %arg4[%c0_5, %c0_6], %10 {strides = array<i32>} : memref<512x128xbf16, #tpu.memory_space<vmem>>, vector<512x128xbf16>,
    return
  }
  func.func @transform_0(%arg0: i32) -> (i32, i32) {
    %c0_i32 = arith.constant 0 : i32
    %c0_i32_0 = arith.constant 0 : i32
    return %arg0, %c0_i32 : i32, i32
  }
  func.func @transform_1(%arg0: i32) -> (i32, i32) {
    %c0_i32 = arith.constant 0 : i32
    %c0_i32_0 = arith.constant 0 : i32
    %c0_i32_1 = arith.constant 0 : i32
    return %c0_i32, %c0_i32_0 : i32, i32
  }
  func.func @transform_2(%arg0: i32) -> (i32, i32) {
    %c0_i32 = arith.constant 0 : i32
    %c0_i32_0 = arith.constant 0 : i32
    %c0_i32_1 = arith.constant 0 : i32
    return %c0_i32, %c0_i32_0 : i32, i32
  }
  func.func @transform_3(%arg0: i32) -> (i32, i32) {
    %c0_i32 = arith.constant 0 : i32
    %c0_i32_0 = arith.constant 0 : i32
    return %arg0, %c0_i32 : i32, i32
  }
}

</mosaic_0001>

<llo_original>
// kernel: _conv_block_impl.3
$region0: #{_conv_block_impl.3}
  #allocation0 [shape = 'u32[]', space=smem, size = 0x4, offset = 0x4, fixed_abs, tag = 'smem constant byte address 0x4 - core index']
  #allocation1 [shape = 'u32[144,128]{1,0:T(1,128)}', space=vmem, size = 0x12000, scoped, tag = 'internal scratch']
  %s0 = inlined_call_operand.vmem [shape: f32[2048,128], index: 0, kind: input, shape index: {}]
  %s1 = inlined_call_operand.vmem [shape: f32[1,128], index: 1, kind: input, shape index: {}]
  %s2 = inlined_call_operand.vmem [shape: f32[1,128], index: 2, kind: input, shape index: {}]
  %s3 = inlined_call_operand.hbm [shape: bf16[2048,128], index: 3, kind: output, shape index: {}]
  %s4 = sld [smem:[#allocation0]]
  $region45: #{_conv_block_impl.3} parent=0
    _
  %s6 = ssub.s32 1, %s4
  %s7 = scalar_select 0, %s6, %s4
  $region1: #{_conv_block_impl.3} parent=0
    #allocation2 [shape = 'u8[262144]{0}', space=vmem, size = 0x40000, scoped, tag = 'output window, operand 0']
    #allocation3 [shape = 's32[2]{0}', space=sflag, size = 0x8, scoped, tag = 'scoped memory for _conv_block_impl.3']
    %8 = vsyncpa [#allocation3], 0
    %s9 = scalar_lea.sflag [#allocation3], 1
    %10 = vsyncpa %s9, 0
    loop: start=0, step=1, limit=6
    $region2: #{_conv_block_impl.3} parent=1 // loop_pre_header
      _
    $region3: #{_conv_block_impl.3} parent=1 // loop_header
      %s12 = sphi 0, %s16
      %p13 = scmp.ge.s32.totalorder %s12, 6
      %s22 = sphi 0, %s24
      %s25 = sphi 0, %s22
      %s26 = sphi 0, %s25
      %s42 = sphi 0, %s26
      %s46 = sphi 0, %s46
      %s48 = sphi 0, %s46
      %s49 = sphi 0, %s48
      %s63 = sphi 0, %s49
      %s67 = sphi 0, %s67
      %s69 = sphi 0, %s67
      %s70 = sphi 0, %s69
      %s84 = sphi 0, %s70
      %s90 = sphi 0, %s92
      %s93 = sphi 0, %s90
      %s94 = sphi 0, %s93
      %s110 = sphi 0, %s94
    $region4: #{_conv_block_impl.3} parent=1 // loop_header_branch
      %15 = sbr.rel (%p13) target = $region8
    $region5: #{_conv_block_impl.3} parent=1 // loop_body
      %s17 = ssub.s32 %s12, 1
      %s18 = ssub.s32 %s12, 2
      %s19 = sadd.s32 %s12, 1
      %s20 = ssub.s32 %s12, %s19
      %p21 = scmp.eq.s32.totalorder %s20, 0
      %s23 = sadd.s32 %s22, 1
      %s24 = scalar_select %p21, %s22, %s23
      %p27 = pneg %p21
      %p28 = scmp.eq.s32.totalorder %s12, 3
      %p29 = por %p27, %p28
      %p30 = scmp.ne.s32.totalorder %s22, %s25
      %p31 = scmp.eq.s32.totalorder %s12, 0
      %p32 = por %p30, %p31
      %p33 = scmp.ne.s32.totalorder %s22, %s25
      %p34 = scmp.eq.s32.totalorder %s17, 3
      %p35 = por %p33, %p34
      %p36 = scmp.ne.s32.totalorder %s25, %s26
      %p37 = scmp.eq.s32.totalorder %s17, 0
      %p38 = por %p36, %p37
      %p39 = scmp.ne.s32.totalorder %s25, %s26
      %p40 = scmp.eq.s32.totalorder %s18, 3
      %p41 = por %p39, %p40
      %p43 = scmp.ne.s32.totalorder %s26, %s42
      %p44 = scmp.eq.s32.totalorder %s18, 0
      %p45 = por %p43, %p44
      %s47 = sadd.s32 %s46, 1
      %p50 = scmp.eq.s32.totalorder %s12, 3
      %p51 = scmp.ne.s32.totalorder %s46, %s48
      %p52 = scmp.eq.s32.totalorder %s12, 0
      %p53 = por %p51, %p52
      %p54 = scmp.ne.s32.totalorder %s46, %s48
      %p55 = scmp.eq.s32.totalorder %s17, 3
      %p56 = por %p54, %p55
      %p57 = scmp.ne.s32.totalorder %s48, %s49
      %p58 = scmp.eq.s32.totalorder %s17, 0
      %p59 = por %p57, %p58
      %p60 = scmp.ne.s32.totalorder %s48, %s49
      %p61 = scmp.eq.s32.totalorder %s18, 3
      %p62 = por %p60, %p61
      %p64 = scmp.ne.s32.totalorder %s49, %s63
      %p65 = scmp.eq.s32.totalorder %s18, 0
      %p66 = por %p64, %p65
      %s68 = sadd.s32 %s67, 1
      %p71 = scmp.eq.s32.totalorder %s12, 3
      %p72 = scmp.ne.s32.totalorder %s67, %s69
      %p73 = scmp.eq.s32.totalorder %s12, 0
      %p74 = por %p72, %p73
      %p75 = scmp.ne.s32.totalorder %s67, %s69
      %p76 = scmp.eq.s32.totalorder %s17, 3
      %p77 = por %p75, %p76
      %p78 = scmp.ne.s32.totalorder %s69, %s70
      %p79 = scmp.eq.s32.totalorder %s17, 0
      %p80 = por %p78, %p79
      %p81 = scmp.ne.s32.totalorder %s69, %s70
      %p82 = scmp.eq.s32.totalorder %s18, 3
      %p83 = por %p81, %p82
      %p85 = scmp.ne.s32.totalorder %s70, %s84
      %p86 = scmp.eq.s32.totalorder %s18, 0
      %p87 = por %p85, %p86
      %s88 = ssub.s32 %s12, %s19
      %p89 = scmp.eq.s32.totalorder %s88, 0
      %s91 = sadd.s32 %s90, 1
      %s92 = scalar_select %p89, %s90, %s91
      %p95 = pneg %p89
      %p96 = scmp.eq.s32.totalorder %s12, 3
      %p97 = por %p95, %p96
      %p98 = scmp.ne.s32.totalorder %s90, %s93
      %p99 = scmp.eq.s32.totalorder %s12, 0
      %p100 = por %p98, %p99
      %p101 = scmp.ne.s32.totalorder %s90, %s93
      %p102 = scmp.eq.s32.totalorder %s17, 3
      %p103 = por %p101, %p102
      %p104 = scmp.ne.s32.totalorder %s93, %s94
      %p105 = scmp.eq.s32.totalorder %s17, 0
      %p106 = por %p104, %p105
      %p107 = scmp.ne.s32.totalorder %s93, %s94
      %p108 = scmp.eq.s32.totalorder %s18, 3
      %p109 = por %p107, %p108
      %p111 = scmp.ne.s32.totalorder %s94, %s110
      %p112 = scmp.eq.s32.totalorder %s18, 0
      %p113 = por %p111, %p112
      %p114 = scmp.le.s32.totalorder 1, %s12
      %p115 = scmp.lt.s32.totalorder %s12, 5
      %p116 = pnand %p114, %p115
      %p117 = pneg %p116
      // Predicated region
      $region9: #{_conv_block_impl.3} parent=5 // pred_check
        _
      $region10: #{_conv_block_impl.3} parent=5 // pred_check_branch
        %119 = sbr.rel (%p116) target = $region12
      $region11: #{_conv_block_impl.3} parent=5 // pred_region
        %s120 = ssub.s32 %s12, 1
        // Predicated region
        $region13: #{_conv_block_impl.3} parent=11 // pred_check
          %p121 = pneg %p59
        $region14: #{_conv_block_impl.3} parent=11 // pred_check_branch
          %123 = sbr.rel (%p121) target = $region16
        $region15: #{_conv_block_impl.3} parent=11 // pred_region
          _
        $region16: #{_conv_block_impl.3} parent=11 // pred_fallthru
          _
        // Predicated region
        $region17: #{_conv_block_impl.3} parent=11 // pred_check
          %p124 = pneg %p80
        $region18: #{_conv_block_impl.3} parent=11 // pred_check_branch
          %126 = sbr.rel (%p124) target = $region20
        $region19: #{_conv_block_impl.3} parent=11 // pred_region
          _
        $region20: #{_conv_block_impl.3} parent=11 // pred_fallthru
          _
      $region12: #{_conv_block_impl.3} parent=5 // pred_fallthru
        _
      %p127 = scmp.lt.s32.totalorder %s12, 4
      // Predicated region
      $region21: #{_conv_block_impl.3} parent=5 // pred_check
        %p128 = pneg %p127
      $region22: #{_conv_block_impl.3} parent=5 // pred_check_branch
        %130 = sbr.rel (%p128) target = $region24
      $region23: #{_conv_block_impl.3} parent=5 // pred_region
        // Predicated region
        $region25: #{_conv_block_impl.3} parent=23 // pred_check
          %p131 = pneg %p32
        $region26: #{_conv_block_impl.3} parent=23 // pred_check_branch
          %133 = sbr.rel (%p131) target = $region28
        $region27: #{_conv_block_impl.3} parent=23 // pred_region
          %s134 = smul.u32 64, %s12
          %p135 = scmp.lt.s32.totalorder %s134, 255
          %s136 = scalar_select %p135, %s134, 255
          %s137 = smul.addr %s136, 8
          %s138 = scalar_lea.vmem %s0, %s137
          %s139 = smul.u32 64, %s12
        $region28: #{_conv_block_impl.3} parent=23 // pred_fallthru
          _
      $region24: #{_conv_block_impl.3} parent=5 // pred_fallthru
        _
      %p140 = scmp.le.s32.totalorder 1, %s12
      %p141 = scmp.lt.s32.totalorder %s12, 5
      %p142 = pnand %p140, %p141
      %p143 = pneg %p142
      // Predicated region
      $region29: #{_conv_block_impl.3} parent=5 // pred_check
        _
      $region30: #{_conv_block_impl.3} parent=5 // pred_check_branch
        %145 = sbr.rel (%p142) target = $region32
      $region31: #{_conv_block_impl.3} parent=5 // pred_region
        %s146 = ssub.s32 %s12, 1
        %s147 = smul.u32 64, %s17
        %p148 = scmp.lt.s32.totalorder %s147, 255
        %s149 = scalar_select %p148, %s147, 255
        %s150 = smul.addr %s149, 8
        %s151 = scalar_lea.vmem %s0, %s150
        %p152 = pneg %p38
        %p153 = pneg %p35
        %p154 = pneg %p59
        %p155 = pneg %p56
        %p156 = pneg %p80
        %p157 = pneg %p77
        %p158 = pneg %p106
        %p159 = pneg %p103
        %s160 = sand.u32 %s93, 1
        %s161 = scalar_lea.sflag [#allocation3], %s160
        %s162 = sand.u32 %s93, 1
        %s163 = smul.addr %s162, 256
        %s164 = scalar_lea.vmem [#allocation2], %s163
        %s165 = smul.u32 64, %s17
        %p166 = scmp.lt.s32.totalorder %s165, 255
        %s167 = scalar_select %p166, %s165, 255
        %s168 = smul.addr %s167, 8
        %s169 = scalar_lea.vmem %s0, %s168
        %s170 = smul.u32 64, %s17
        %s171 = smul.u32 64, %s17
        %v172 = vld [vmem:[%s169] sm:$0xff]
        %v173 = vld [vmem:[%s169 + $0x8] sm:$0xff]
        %v174 = vld [vmem:[%s169 + $0x10] sm:$0xff]
        %v175 = vld [vmem:[%s169 + $0x18] sm:$0xff]
        %v176 = vld [vmem:[%s169 + $0x20] sm:$0xff]
        %v177 = vld [vmem:[%s169 + $0x28] sm:$0xff]
        %v178 = vld [vmem:[%s169 + $0x30] sm:$0xff]
        %v179 = vld [vmem:[%s169 + $0x38] sm:$0xff]
        %v180 = vld [vmem:[%s169 + $0x40] sm:$0xff]
        %v181 = vld [vmem:[%s169 + $0x48] sm:$0xff]
        %v182 = vld [vmem:[%s169 + $0x50] sm:$0xff]
        %v183 = vld [vmem:[%s169 + $0x58] sm:$0xff]
        %v184 = vld [vmem:[%s169 + $0x60] sm:$0xff]
        %v185 = vld [vmem:[%s169 + $0x68] sm:$0xff]
        %v186 = vld [vmem:[%s169 + $0x70] sm:$0xff]
        %v187 = vld [vmem:[%s169 + $0x78] sm:$0xff]
        %v188 = vld [vmem:[%s169 + $0x80] sm:$0xff]
        %v189 = vld [vmem:[%s169 + $0x88] sm:$0xff]
        %v190 = vld [vmem:[%s169 + $0x90] sm:$0xff]
        %v191 = vld [vmem:[%s169 + $0x98] sm:$0xff]
        %v192 = vld [vmem:[%s169 + $0xa0] sm:$0xff]
        %v193 = vld [vmem:[%s169 + $0xa8] sm:$0xff]
        %v194 = vld [vmem:[%s169 + $0xb0] sm:$0xff]
        %v195 = vld [vmem:[%s169 + $0xb8] sm:$0xff]
        %v196 = vld [vmem:[%s169 + $0xc0] sm:$0xff]
        %v197 = vld [vmem:[%s169 + $0xc8] sm:$0xff]
        %v198 = vld [vmem:[%s169 + $0xd0] sm:$0xff]
        %v199 = vld [vmem:[%s169 + $0xd8] sm:$0xff]
        %v200 = vld [vmem:[%s169 + $0xe0] sm:$0xff]
        %v201 = vld [vmem:[%s169 + $0xe8] sm:$0xff]
        %v202 = vld [vmem:[%s169 + $0xf0] sm:$0xff]
        %v203 = vld [vmem:[%s169 + $0xf8] sm:$0xff]
        %v204 = vld [vmem:[%s169 + $0x100] sm:$0xff]
        %v205 = vld [vmem:[%s169 + $0x108] sm:$0xff]
        %v206 = vld [vmem:[%s169 + $0x110] sm:$0xff]
        %v207 = vld [vmem:[%s169 + $0x118] sm:$0xff]
        %v208 = vld [vmem:[%s169 + $0x120] sm:$0xff]
        %v209 = vld [vmem:[%s169 + $0x128] sm:$0xff]
        %v210 = vld [vmem:[%s169 + $0x130] sm:$0xff]
        %v211 = vld [vmem:[%s169 + $0x138] sm:$0xff]
        %v212 = vld [vmem:[%s169 + $0x140] sm:$0xff]
        %v213 = vld [vmem:[%s169 + $0x148] sm:$0xff]
        %v214 = vld [vmem:[%s169 + $0x150] sm:$0xff]
        %v215 = vld [vmem:[%s169 + $0x158] sm:$0xff]
        %v216 = vld [vmem:[%s169 + $0x160] sm:$0xff]
        %v217 = vld [vmem:[%s169 + $0x168] sm:$0xff]
        %v218 = vld [vmem:[%s169 + $0x170] sm:$0xff]
        %v219 = vld [vmem:[%s169 + $0x178] sm:$0xff]
        %v220 = vld [vmem:[%s169 + $0x180] sm:$0xff]
        %v221 = vld [vmem:[%s169 + $0x188] sm:$0xff]
        %v222 = vld [vmem:[%s169 + $0x190] sm:$0xff]
        %v223 = vld [vmem:[%s169 + $0x198] sm:$0xff]
        %v224 = vld [vmem:[%s169 + $0x1a0] sm:$0xff]
        %v225 = vld [vmem:[%s169 + $0x1a8] sm:$0xff]
        %v226 = vld [vmem:[%s169 + $0x1b0] sm:$0xff]
        %v227 = vld [vmem:[%s169 + $0x1b8] sm:$0xff]
        %v228 = vld [vmem:[%s169 + $0x1c0] sm:$0xff]
        %v229 = vld [vmem:[%s169 + $0x1c8] sm:$0xff]
        %v230 = vld [vmem:[%s169 + $0x1d0] sm:$0xff]
        %v231 = vld [vmem:[%s169 + $0x1d8] sm:$0xff]
        %v232 = vld [vmem:[%s169 + $0x1e0] sm:$0xff]
        %v233 = vld [vmem:[%s169 + $0x1e8] sm:$0xff]
        %v234 = vld [vmem:[%s169 + $0x1f0] sm:$0xff]
        %v235 = vld [vmem:[%s169 + $0x1f8] sm:$0xff]
        %v236 = vld [vmem:[%s1] sm:$0x1]
        %v238 = vlaneseq
        %v239 = vshrl.u32 %v238, 7
        %v240 = vsub.s32 0, %v239
        %v241 = vrot.slane %v236, %v240
        %v243 = vmul.f32 %v172, %v241
        %v244 = vmul.f32 %v173, %v241
        %v245 = vmul.f32 %v174, %v241
        %v246 = vmul.f32 %v175, %v241
        %v247 = vmul.f32 %v176, %v241
        %v248 = vmul.f32 %v177, %v241
        %v249 = vmul.f32 %v178, %v241
        %v250 = vmul.f32 %v179, %v241
        %v251 = vmul.f32 %v180, %v241
        %v252 = vmul.f32 %v181, %v241
        %v253 = vmul.f32 %v182, %v241
        %v254 = vmul.f32 %v183, %v241
        %v255 = vmul.f32 %v184, %v241
        %v256 = vmul.f32 %v185, %v241
        %v257 = vmul.f32 %v186, %v241
        %v258 = vmul.f32 %v187, %v241
        %v259 = vmul.f32 %v188, %v241
        %v260 = vmul.f32 %v189, %v241
        %v261 = vmul.f32 %v190, %v241
        %v262 = vmul.f32 %v191, %v241
        %v263 = vmul.f32 %v192, %v241
        %v264 = vmul.f32 %v193, %v241
        %v265 = vmul.f32 %v194, %v241
        %v266 = vmul.f32 %v195, %v241
        %v267 = vmul.f32 %v196, %v241
        %v268 = vmul.f32 %v197, %v241
        %v269 = vmul.f32 %v198, %v241
        %v270 = vmul.f32 %v199, %v241
        %v271 = vmul.f32 %v200, %v241
        %v272 = vmul.f32 %v201, %v241
        %v273 = vmul.f32 %v202, %v241
        %v274 = vmul.f32 %v203, %v241
        %v275 = vmul.f32 %v204, %v241
        %v276 = vmul.f32 %v205, %v241
        %v277 = vmul.f32 %v206, %v241
        %v278 = vmul.f32 %v207, %v241
        %v279 = vmul.f32 %v208, %v241
        %v280 = vmul.f32 %v209, %v241
        %v281 = vmul.f32 %v210, %v241
        %v282 = vmul.f32 %v211, %v241
        %v283 = vmul.f32 %v212, %v241
        %v284 = vmul.f32 %v213, %v241
        %v285 = vmul.f32 %v214, %v241
        %v286 = vmul.f32 %v215, %v241
        %v287 = vmul.f32 %v216, %v241
        %v288 = vmul.f32 %v217, %v241
        %v289 = vmul.f32 %v218, %v241
        %v290 = vmul.f32 %v219, %v241
        %v291 = vmul.f32 %v220, %v241
        %v292 = vmul.f32 %v221, %v241
        %v293 = vmul.f32 %v222, %v241
        %v294 = vmul.f32 %v223, %v241
        %v295 = vmul.f32 %v224, %v241
        %v296 = vmul.f32 %v225, %v241
        %v297 = vmul.f32 %v226, %v241
        %v298 = vmul.f32 %v227, %v241
        %v299 = vmul.f32 %v228, %v241
        %v300 = vmul.f32 %v229, %v241
        %v301 = vmul.f32 %v230, %v241
        %v302 = vmul.f32 %v231, %v241
        %v303 = vmul.f32 %v232, %v241
        %v304 = vmul.f32 %v233, %v241
        %v305 = vmul.f32 %v234, %v241
        %v306 = vmul.f32 %v235, %v241
        %v307 = vld [vmem:[%s2] sm:$0x1]
        %v309 = vlaneseq
        %v310 = vshrl.u32 %v309, 7
        %v311 = vsub.s32 0, %v310
        %v312 = vrot.slane %v307, %v311
        %v314 = vadd.f32 %v243, %v312
        %v315 = vadd.f32 %v244, %v312
        %v316 = vadd.f32 %v245, %v312
        %v317 = vadd.f32 %v246, %v312
        %v318 = vadd.f32 %v247, %v312
        %v319 = vadd.f32 %v248, %v312
        %v320 = vadd.f32 %v249, %v312
        %v321 = vadd.f32 %v250, %v312
        %v322 = vadd.f32 %v251, %v312
        %v323 = vadd.f32 %v252, %v312
        %v324 = vadd.f32 %v253, %v312
        %v325 = vadd.f32 %v254, %v312
        %v326 = vadd.f32 %v255, %v312
        %v327 = vadd.f32 %v256, %v312
        %v328 = vadd.f32 %v257, %v312
        %v329 = vadd.f32 %v258, %v312
        %v330 = vadd.f32 %v259, %v312
        %v331 = vadd.f32 %v260, %v312
        %v332 = vadd.f32 %v261, %v312
        %v333 = vadd.f32 %v262, %v312
        %v334 = vadd.f32 %v263, %v312
        %v335 = vadd.f32 %v264, %v312
        %v336 = vadd.f32 %v265, %v312
        %v337 = vadd.f32 %v266, %v312
        %v338 = vadd.f32 %v267, %v312
        %v339 = vadd.f32 %v268, %v312
        %v340 = vadd.f32 %v269, %v312
        %v341 = vadd.f32 %v270, %v312
        %v342 = vadd.f32 %v271, %v312
        %v343 = vadd.f32 %v272, %v312
        %v344 = vadd.f32 %v273, %v312
        %v345 = vadd.f32 %v274, %v312
        %v346 = vadd.f32 %v275, %v312
        %v347 = vadd.f32 %v276, %v312
        %v348 = vadd.f32 %v277, %v312
        %v349 = vadd.f32 %v278, %v312
        %v350 = vadd.f32 %v279, %v312
        %v351 = vadd.f32 %v280, %v312
        %v352 = vadd.f32 %v281, %v312
        %v353 = vadd.f32 %v282, %v312
        %v354 = vadd.f32 %v283, %v312
        %v355 = vadd.f32 %v284, %v312
        %v356 = vadd.f32 %v285, %v312
        %v357 = vadd.f32 %v286, %v312
        %v358 = vadd.f32 %v287, %v312
        %v359 = vadd.f32 %v288, %v312
        %v360 = vadd.f32 %v289, %v312
        %v361 = vadd.f32 %v290, %v312
        %v362 = vadd.f32 %v291, %v312
        %v363 = vadd.f32 %v292, %v312
        %v364 = vadd.f32 %v293, %v312
        %v365 = vadd.f32 %v294, %v312
        %v366 = vadd.f32 %v295, %v312
        %v367 = vadd.f32 %v296, %v312
        %v368 = vadd.f32 %v297, %v312
        %v369 = vadd.f32 %v298, %v312
        %v370 = vadd.f32 %v299, %v312
        %v371 = vadd.f32 %v300, %v312
        %v372 = vadd.f32 %v301, %v312
        %v373 = vadd.f32 %v302, %v312
        %v374 = vadd.f32 %v303, %v312
        %v375 = vadd.f32 %v304, %v312
        %v376 = vadd.f32 %v305, %v312
        %v377 = vadd.f32 %v306, %v312
        %v378 = vmul.f32 %v314, 0.1
        %v379 = vmul.f32 %v315, 0.1
        %v380 = vmul.f32 %v316, 0.1
        %v381 = vmul.f32 %v317, 0.1
        %v382 = vmul.f32 %v318, 0.1
        %v383 = vmul.f32 %v319, 0.1
        %v384 = vmul.f32 %v320, 0.1
        %v385 = vmul.f32 %v321, 0.1
        %v386 = vmul.f32 %v322, 0.1
        %v387 = vmul.f32 %v323, 0.1
        %v388 = vmul.f32 %v324, 0.1
        %v389 = vmul.f32 %v325, 0.1
        %v390 = vmul.f32 %v326, 0.1
        %v391 = vmul.f32 %v327, 0.1
        %v392 = vmul.f32 %v328, 0.1
        %v393 = vmul.f32 %v329, 0.1
        %v394 = vmul.f32 %v330, 0.1
        %v395 = vmul.f32 %v331, 0.1
        %v396 = vmul.f32 %v332, 0.1
        %v397 = vmul.f32 %v333, 0.1
        %v398 = vmul.f32 %v334, 0.1
        %v399 = vmul.f32 %v335, 0.1
        %v400 = vmul.f32 %v336, 0.1
        %v401 = vmul.f32 %v337, 0.1
        %v402 = vmul.f32 %v338, 0.1
        %v403 = vmul.f32 %v339, 0.1
        %v404 = vmul.f32 %v340, 0.1
        %v405 = vmul.f32 %v341, 0.1
        %v406 = vmul.f32 %v342, 0.1
        %v407 = vmul.f32 %v343, 0.1
        %v408 = vmul.f32 %v344, 0.1
        %v409 = vmul.f32 %v345, 0.1
        %v410 = vmul.f32 %v346, 0.1
        %v411 = vmul.f32 %v347, 0.1
        %v412 = vmul.f32 %v348, 0.1
        %v413 = vmul.f32 %v349, 0.1
        %v414 = vmul.f32 %v350, 0.1
        %v415 = vmul.f32 %v351, 0.1
        %v416 = vmul.f32 %v352, 0.1
        %v417 = vmul.f32 %v353, 0.1
        %v418 = vmul.f32 %v354, 0.1
        %v419 = vmul.f32 %v355, 0.1
        %v420 = vmul.f32 %v356, 0.1
        %v421 = vmul.f32 %v357, 0.1
        %v422 = vmul.f32 %v358, 0.1
        %v423 = vmul.f32 %v359, 0.1
        %v424 = vmul.f32 %v360, 0.1
        %v425 = vmul.f32 %v361, 0.1
        %v426 = vmul.f32 %v362, 0.1
        %v427 = vmul.f32 %v363, 0.1
        %v428 = vmul.f32 %v364, 0.1
        %v429 = vmul.f32 %v365, 0.1
        %v430 = vmul.f32 %v366, 0.1
        %v431 = vmul.f32 %v367, 0.1
        %v432 = vmul.f32 %v368, 0.1
        %v433 = vmul.f32 %v369, 0.1
        %v434 = vmul.f32 %v370, 0.1
        %v435 = vmul.f32 %v371, 0.1
        %v436 = vmul.f32 %v372, 0.1
        %v437 = vmul.f32 %v373, 0.1
        %v438 = vmul.f32 %v374, 0.1
        %v439 = vmul.f32 %v375, 0.1
        %v440 = vmul.f32 %v376, 0.1
        %v441 = vmul.f32 %v377, 0.1
        %v442 = vmax.f32 %v314, %v378
        %v443 = vmax.f32 %v315, %v379
        %v444 = vmax.f32 %v316, %v380
        %v445 = vmax.f32 %v317, %v381
        %v446 = vmax.f32 %v318, %v382
        %v447 = vmax.f32 %v319, %v383
        %v448 = vmax.f32 %v320, %v384
        %v449 = vmax.f32 %v321, %v385
        %v450 = vmax.f32 %v322, %v386
        %v451 = vmax.f32 %v323, %v387
        %v452 = vmax.f32 %v324, %v388
        %v453 = vmax.f32 %v325, %v389
        %v454 = vmax.f32 %v326, %v390
        %v455 = vmax.f32 %v327, %v391
        %v456 = vmax.f32 %v328, %v392
        %v457 = vmax.f32 %v329, %v393
        %v458 = vmax.f32 %v330, %v394
        %v459 = vmax.f32 %v331, %v395
        %v460 = vmax.f32 %v332, %v396
        %v461 = vmax.f32 %v333, %v397
        %v462 = vmax.f32 %v334, %v398
        %v463 = vmax.f32 %v335, %v399
        %v464 = vmax.f32 %v336, %v400
        %v465 = vmax.f32 %v337, %v401
        %v466 = vmax.f32 %v338, %v402
        %v467 = vmax.f32 %v339, %v403
        %v468 = vmax.f32 %v340, %v404
        %v469 = vmax.f32 %v341, %v405
        %v470 = vmax.f32 %v342, %v406
        %v471 = vmax.f32 %v343, %v407
        %v472 = vmax.f32 %v344, %v408
        %v473 = vmax.f32 %v345, %v409
        %v474 = vmax.f32 %v346, %v410
        %v475 = vmax.f32 %v347, %v411
        %v476 = vmax.f32 %v348, %v412
        %v477 = vmax.f32 %v349, %v413
        %v478 = vmax.f32 %v350, %v414
        %v479 = vmax.f32 %v351, %v415
        %v480 = vmax.f32 %v352, %v416
        %v481 = vmax.f32 %v353, %v417
        %v482 = vmax.f32 %v354, %v418
        %v483 = vmax.f32 %v355, %v419
        %v484 = vmax.f32 %v356, %v420
        %v485 = vmax.f32 %v357, %v421
        %v486 = vmax.f32 %v358, %v422
        %v487 = vmax.f32 %v359, %v423
        %v488 = vmax.f32 %v360, %v424
        %v489 = vmax.f32 %v361, %v425
        %v490 = vmax.f32 %v362, %v426
        %v491 = vmax.f32 %v363, %v427
        %v492 = vmax.f32 %v364, %v428
        %v493 = vmax.f32 %v365, %v429
        %v494 = vmax.f32 %v366, %v430
        %v495 = vmax.f32 %v367, %v431
        %v496 = vmax.f32 %v368, %v432
        %v497 = vmax.f32 %v369, %v433
        %v498 = vmax.f32 %v370, %v434
        %v499 = vmax.f32 %v371, %v435
        %v500 = vmax.f32 %v372, %v436
        %v501 = vmax.f32 %v373, %v437
        %v502 = vmax.f32 %v374, %v438
        %v503 = vmax.f32 %v375, %v439
        %v504 = vmax.f32 %v376, %v440
        %v505 = vmax.f32 %v377, %v441
        %v506 = vpack.c.bf16 %v443, %v442
        %v507 = vpack.c.bf16 %v445, %v444
        %v508 = vpack.c.bf16 %v447, %v446
        %v509 = vpack.c.bf16 %v449, %v448
        %v510 = vpack.c.bf16 %v451, %v450
        %v511 = vpack.c.bf16 %v453, %v452
        %v512 = vpack.c.bf16 %v455, %v454
        %v513 = vpack.c.bf16 %v457, %v456
        %v514 = vpack.c.bf16 %v459, %v458
        %v515 = vpack.c.bf16 %v461, %v460
        %v516 = vpack.c.bf16 %v463, %v462
        %v517 = vpack.c.bf16 %v465, %v464
        %v518 = vpack.c.bf16 %v467, %v466
        %v519 = vpack.c.bf16 %v469, %v468
        %v520 = vpack.c.bf16 %v471, %v470
        %v521 = vpack.c.bf16 %v473, %v472
        %v522 = vpack.c.bf16 %v475, %v474
        %v523 = vpack.c.bf16 %v477, %v476
        %v524 = vpack.c.bf16 %v479, %v478
        %v525 = vpack.c.bf16 %v481, %v480
        %v526 = vpack.c.bf16 %v483, %v482
        %v527 = vpack.c.bf16 %v485, %v484
        %v528 = vpack.c.bf16 %v487, %v486
        %v529 = vpack.c.bf16 %v489, %v488
        %v530 = vpack.c.bf16 %v491, %v490
        %v531 = vpack.c.bf16 %v493, %v492
        %v532 = vpack.c.bf16 %v495, %v494
        %v533 = vpack.c.bf16 %v497, %v496
        %v534 = vpack.c.bf16 %v499, %v498
        %v535 = vpack.c.bf16 %v501, %v500
        %v536 = vpack.c.bf16 %v503, %v502
        %v537 = vpack.c.bf16 %v505, %v504
        %v570 = vunpack.c.l.b16 %v506
        %v571 = vunpack.c.h.b16 %v506
        %v572 = vunpack.c.l.b16 %v507
        %v573 = vunpack.c.h.b16 %v507
        %v574 = vunpack.c.l.b16 %v508
        %v575 = vunpack.c.h.b16 %v508
        %v576 = vunpack.c.l.b16 %v509
        %v577 = vunpack.c.h.b16 %v509
        %v578 = vunpack.c.l.b16 %v510
        %v579 = vunpack.c.h.b16 %v510
        %v580 = vunpack.c.l.b16 %v511
        %v581 = vunpack.c.h.b16 %v511
        %v582 = vunpack.c.l.b16 %v512
        %v583 = vunpack.c.h.b16 %v512
        %v584 = vunpack.c.l.b16 %v513
        %v585 = vunpack.c.h.b16 %v513
        %v586 = vunpack.c.l.b16 %v514
        %v587 = vunpack.c.h.b16 %v514
        %v588 = vunpack.c.l.b16 %v515
        %v589 = vunpack.c.h.b16 %v515
        %v590 = vunpack.c.l.b16 %v516
        %v591 = vunpack.c.h.b16 %v516
        %v592 = vunpack.c.l.b16 %v517
        %v593 = vunpack.c.h.b16 %v517
        %v594 = vunpack.c.l.b16 %v518
        %v595 = vunpack.c.h.b16 %v518
        %v596 = vunpack.c.l.b16 %v519
        %v597 = vunpack.c.h.b16 %v519
        %v598 = vunpack.c.l.b16 %v520
        %v599 = vunpack.c.h.b16 %v520
        %v600 = vunpack.c.l.b16 %v521
        %v601 = vunpack.c.h.b16 %v521
        %v602 = vunpack.c.l.b16 %v522
        %v603 = vunpack.c.h.b16 %v522
        %v604 = vunpack.c.l.b16 %v523
        %v605 = vunpack.c.h.b16 %v523
        %v606 = vunpack.c.l.b16 %v524
        %v607 = vunpack.c.h.b16 %v524
        %v608 = vunpack.c.l.b16 %v525
        %v609 = vunpack.c.h.b16 %v525
        %v610 = vunpack.c.l.b16 %v526
        %v611 = vunpack.c.h.b16 %v526
        %v612 = vunpack.c.l.b16 %v527
        %v613 = vunpack.c.h.b16 %v527
        %v614 = vunpack.c.l.b16 %v528
        %v615 = vunpack.c.h.b16 %v528
        %v616 = vunpack.c.l.b16 %v529
        %v617 = vunpack.c.h.b16 %v529
        %v618 = vunpack.c.l.b16 %v530
        %v619 = vunpack.c.h.b16 %v530
        %v620 = vunpack.c.l.b16 %v531
        %v621 = vunpack.c.h.b16 %v531
        %v622 = vunpack.c.l.b16 %v532
        %v623 = vunpack.c.h.b16 %v532
        %v624 = vunpack.c.l.b16 %v533
        %v625 = vunpack.c.h.b16 %v533
        %v626 = vunpack.c.l.b16 %v534
        %v627 = vunpack.c.h.b16 %v534
        %v628 = vunpack.c.l.b16 %v535
        %v629 = vunpack.c.h.b16 %v535
        %v630 = vunpack.c.l.b16 %v536
        %v631 = vunpack.c.h.b16 %v536
        %v632 = vunpack.c.l.b16 %v537
        %v633 = vunpack.c.h.b16 %v537
        %v634 = vpack.c.b16 %v570, %v570
        %v635 = vpack.c.b16 %v571, %v571
        %v636 = vpack.c.b16 %v572, %v572
        %v637 = vpack.c.b16 %v573, %v573
        %v638 = vpack.c.b16 %v574, %v574
        %v639 = vpack.c.b16 %v575, %v575
        %v640 = vpack.c.b16 %v576, %v576
        %v641 = vpack.c.b16 %v577, %v577
        %v642 = vpack.c.b16 %v578, %v578
        %v643 = vpack.c.b16 %v579, %v579
        %v644 = vpack.c.b16 %v580, %v580
        %v645 = vpack.c.b16 %v581, %v581
        %v646 = vpack.c.b16 %v582, %v582
        %v647 = vpack.c.b16 %v583, %v583
        %v648 = vpack.c.b16 %v584, %v584
        %v649 = vpack.c.b16 %v585, %v585
        %v650 = vpack.c.b16 %v586, %v586
        %v651 = vpack.c.b16 %v587, %v587
        %v652 = vpack.c.b16 %v588, %v588
        %v653 = vpack.c.b16 %v589, %v589
        %v654 = vpack.c.b16 %v590, %v590
        %v655 = vpack.c.b16 %v591, %v591
        %v656 = vpack.c.b16 %v592, %v592
        %v657 = vpack.c.b16 %v593, %v593
        %v658 = vpack.c.b16 %v594, %v594
        %v659 = vpack.c.b16 %v595, %v595
        %v660 = vpack.c.b16 %v596, %v596
        %v661 = vpack.c.b16 %v597, %v597
        %v662 = vpack.c.b16 %v598, %v598
        %v663 = vpack.c.b16 %v599, %v599
        %v664 = vpack.c.b16 %v600, %v600
        %v665 = vpack.c.b16 %v601, %v601
        %v666 = vpack.c.b16 %v602, %v602
        %v667 = vpack.c.b16 %v603, %v603
        %v668 = vpack.c.b16 %v604, %v604
        %v669 = vpack.c.b16 %v605, %v605
        %v670 = vpack.c.b16 %v606, %v606
        %v671 = vpack.c.b16 %v607, %v607
        %v672 = vpack.c.b16 %v608, %v608
        %v673 = vpack.c.b16 %v609, %v609
        %v674 = vpack.c.b16 %v610, %v610
        %v675 = vpack.c.b16 %v611, %v611
        %v676 = vpack.c.b16 %v612, %v612
        %v677 = vpack.c.b16 %v613, %v613
        %v678 = vpack.c.b16 %v614, %v614
        %v679 = vpack.c.b16 %v615, %v615
        %v680 = vpack.c.b16 %v616, %v616
        %v681 = vpack.c.b16 %v617, %v617
        %v682 = vpack.c.b16 %v618, %v618
        %v683 = vpack.c.b16 %v619, %v619
        %v684 = vpack.c.b16 %v620, %v620
        %v685 = vpack.c.b16 %v621, %v621
        %v686 = vpack.c.b16 %v622, %v622
        %v687 = vpack.c.b16 %v623, %v623
        %v688 = vpack.c.b16 %v624, %v624
        %v689 = vpack.c.b16 %v625, %v625
        %v690 = vpack.c.b16 %v626, %v626
        %v691 = vpack.c.b16 %v627, %v627
        %v692 = vpack.c.b16 %v628, %v628
        %v693 = vpack.c.b16 %v629, %v629
        %v694 = vpack.c.b16 %v630, %v630
        %v695 = vpack.c.b16 %v631, %v631
        %v696 = vpack.c.b16 %v632, %v632
        %v697 = vpack.c.b16 %v633, %v633
        %762 = vst [vmem:[%s164] sm:$0xf] %v634
        %763 = vst [vmem:[%s164 + $0x4] sm:$0xf] %v635
        %764 = vst [vmem:[%s164 + $0x8] sm:$0xf] %v636
        %765 = vst [vmem:[%s164 + $0xc] sm:$0xf] %v637
        %766 = vst [vmem:[%s164 + $0x10] sm:$0xf] %v638
        %767 = vst [vmem:[%s164 + $0x14] sm:$0xf] %v639
        %768 = vst [vmem:[%s164 + $0x18] sm:$0xf] %v640
        %769 = vst [vmem:[%s164 + $0x1c] sm:$0xf] %v641
        %770 = vst [vmem:[%s164 + $0x20] sm:$0xf] %v642
        %771 = vst [vmem:[%s164 + $0x24] sm:$0xf] %v643
        %772 = vst [vmem:[%s164 + $0x28] sm:$0xf] %v644
        %773 = vst [vmem:[%s164 + $0x2c] sm:$0xf] %v645
        %774 = vst [vmem:[%s164 + $0x30] sm:$0xf] %v646
        %775 = vst [vmem:[%s164 + $0x34] sm:$0xf] %v647
        %776 = vst [vmem:[%s164 + $0x38] sm:$0xf] %v648
        %777 = vst [vmem:[%s164 + $0x3c] sm:$0xf] %v649
        %778 = vst [vmem:[%s164 + $0x40] sm:$0xf] %v650
        %779 = vst [vmem:[%s164 + $0x44] sm:$0xf] %v651
        %780 = vst [vmem:[%s164 + $0x48] sm:$0xf] %v652
        %781 = vst [vmem:[%s164 + $0x4c] sm:$0xf] %v653
        %782 = vst [vmem:[%s164 + $0x50] sm:$0xf] %v654
        %783 = vst [vmem:[%s164 + $0x54] sm:$0xf] %v655
        %784 = vst [vmem:[%s164 + $0x58] sm:$0xf] %v656
        %785 = vst [vmem:[%s164 + $0x5c] sm:$0xf] %v657
        %786 = vst [vmem:[%s164 + $0x60] sm:$0xf] %v658
        %787 = vst [vmem:[%s164 + $0x64] sm:$0xf] %v659
        %788 = vst [vmem:[%s164 + $0x68] sm:$0xf] %v660
        %789 = vst [vmem:[%s164 + $0x6c] sm:$0xf] %v661
        %790 = vst [vmem:[%s164 + $0x70] sm:$0xf] %v662
        %791 = vst [vmem:[%s164 + $0x74] sm:$0xf] %v663
        %792 = vst [vmem:[%s164 + $0x78] sm:$0xf] %v664
        %793 = vst [vmem:[%s164 + $0x7c] sm:$0xf] %v665
        %794 = vst [vmem:[%s164 + $0x80] sm:$0xf] %v666
        %795 = vst [vmem:[%s164 + $0x84] sm:$0xf] %v667
        %796 = vst [vmem:[%s164 + $0x88] sm:$0xf] %v668
        %797 = vst [vmem:[%s164 + $0x8c] sm:$0xf] %v669
        %798 = vst [vmem:[%s164 + $0x90] sm:$0xf] %v670
        %799 = vst [vmem:[%s164 + $0x94] sm:$0xf] %v671
        %800 = vst [vmem:[%s164 + $0x98] sm:$0xf] %v672
        %801 = vst [vmem:[%s164 + $0x9c] sm:$0xf] %v673
        %802 = vst [vmem:[%s164 + $0xa0] sm:$0xf] %v674
        %803 = vst [vmem:[%s164 + $0xa4] sm:$0xf] %v675
        %804 = vst [vmem:[%s164 + $0xa8] sm:$0xf] %v676
        %805 = vst [vmem:[%s164 + $0xac] sm:$0xf] %v677
        %806 = vst [vmem:[%s164 + $0xb0] sm:$0xf] %v678
        %807 = vst [vmem:[%s164 + $0xb4] sm:$0xf] %v679
        %808 = vst [vmem:[%s164 + $0xb8] sm:$0xf] %v680
        %809 = vst [vmem:[%s164 + $0xbc] sm:$0xf] %v681
        %810 = vst [vmem:[%s164 + $0xc0] sm:$0xf] %v682
        %811 = vst [vmem:[%s164 + $0xc4] sm:$0xf] %v683
        %812 = vst [vmem:[%s164 + $0xc8] sm:$0xf] %v684
        %813 = vst [vmem:[%s164 + $0xcc] sm:$0xf] %v685
        %814 = vst [vmem:[%s164 + $0xd0] sm:$0xf] %v686
        %815 = vst [vmem:[%s164 + $0xd4] sm:$0xf] %v687
        %816 = vst [vmem:[%s164 + $0xd8] sm:$0xf] %v688
        %817 = vst [vmem:[%s164 + $0xdc] sm:$0xf] %v689
        %818 = vst [vmem:[%s164 + $0xe0] sm:$0xf] %v690
        %819 = vst [vmem:[%s164 + $0xe4] sm:$0xf] %v691
        %820 = vst [vmem:[%s164 + $0xe8] sm:$0xf] %v692
        %821 = vst [vmem:[%s164 + $0xec] sm:$0xf] %v693
        %822 = vst [vmem:[%s164 + $0xf0] sm:$0xf] %v694
        %823 = vst [vmem:[%s164 + $0xf4] sm:$0xf] %v695
        %824 = vst [vmem:[%s164 + $0xf8] sm:$0xf] %v696
        %825 = vst [vmem:[%s164 + $0xfc] sm:$0xf] %v697
        %s826 = sand.u32 %s93, 1
        %s827 = scalar_lea.sflag [#allocation3], %s826
        %s828 = sand.u32 %s93, 1
        %s829 = smul.addr %s828, 256
        %s830 = scalar_lea.vmem [#allocation2], %s829
        // Predicated region
        $region33: #{_conv_block_impl.3} parent=31 // pred_check
          %p831 = pneg %p103
        $region34: #{_conv_block_impl.3} parent=31 // pred_check_branch
          %833 = sbr.rel (%p831) target = $region36
        $region35: #{_conv_block_impl.3} parent=31 // pred_region
          %s834 = smul.u32 64, %s17
          %s836 = ssub.s32 4096, 4096
          %837 = vsyncadd %s827, %s836
          %s838 = smul.addr %s834, 64
          %s839 = scalar_lea.hbm %s3, %s838
          %s840 = sshll.u32 %s830, 4
          %s841 = int_to_ptr.vmem [resolvable:$true] %s840
          %846 = dma.vmem_to_hbm [thread:$0]  %s841, 4096, %s839, %s827, 64, 64, 4
        $region36: #{_conv_block_impl.3} parent=31 // pred_fallthru
          _
      $region32: #{_conv_block_impl.3} parent=5 // pred_fallthru
        _
      %p847 = scmp.le.s32.totalorder 2, %s12
      // Predicated region
      $region37: #{_conv_block_impl.3} parent=5 // pred_check
        %p848 = pneg %p847
      $region38: #{_conv_block_impl.3} parent=5 // pred_check_branch
        %850 = sbr.rel (%p848) target = $region40
      $region39: #{_conv_block_impl.3} parent=5 // pred_region
        %s851 = ssub.s32 %s12, 2
        // Predicated region
        $region41: #{_conv_block_impl.3} parent=39 // pred_check
          %p852 = pneg %p109
        $region42: #{_conv_block_impl.3} parent=39 // pred_check_branch
          %854 = sbr.rel (%p852) target = $region44
        $region43: #{_conv_block_impl.3} parent=39 // pred_region
          %s855 = sand.u32 %s94, 1
          %s856 = scalar_lea.sflag [#allocation3], %s855
          %s857 = sand.u32 %s94, 1
          %s858 = smul.addr %s857, 256
          %s859 = scalar_lea.vmem [#allocation2], %s858
          %860 = dma.done %s856, 4096
        $region44: #{_conv_block_impl.3} parent=39 // pred_fallthru
          _
      $region40: #{_conv_block_impl.3} parent=5 // pred_fallthru
        _
    $region6: #{_conv_block_impl.3} parent=1 // loop_footer
      %s16 = sadd.s32 1, %s12
    $region7: #{_conv_block_impl.3} parent=1 // loop_footer_branch
      %11 = sbr.rel target = $region3
    $region8: #{_conv_block_impl.3} parent=1 // loop_exit
      _
    %861 = vsyncpa [#allocation3], 1
    %s862 = scalar_lea.sflag [#allocation3], 1
    %863 = vsyncpa %s862, 1

// kernel: _conv_block_impl.2
$region0: #{_conv_block_impl.2}
  #allocation0 [shape = 'u32[]', space=smem, size = 0x4, offset = 0x4, fixed_abs, tag = 'smem constant byte address 0x4 - core index']
  #allocation1 [shape = 'u32[144,128]{1,0:T(1,128)}', space=vmem, size = 0x12000, scoped, tag = 'internal scratch']
  %s0 = inlined_call_operand.vmem [shape: bf16[2048,128], index: 0, kind: input, shape index: {}]
  %s1 = inlined_call_operand.vmem [shape: bf16[128,128], index: 1, kind: input, shape index: {}]
  %s2 = inlined_call_operand.vmem [shape: f32[2048,128], index: 2, kind: output, shape index: {0}]
  %s3 = inlined_call_operand.vmem [shape: f32[32,128], index: 3, kind: output, shape index: {1}]
  %4 = xla_tuple %s2, %s3
  %s5 = sld [smem:[#allocation0]]
  $region57: #{_conv_block_impl.2} parent=0
    _
  %s7 = ssub.s32 1, %s5
  %s8 = scalar_select 0, %s7, %s5
  loop: start=0, step=1, limit=6
  $region2: #{_conv_block_impl.2} parent=0 // loop_pre_header
    _
  $region3: #{_conv_block_impl.2} parent=0 // loop_header
    %s10 = sphi 0, %s14
    %p11 = scmp.ge.s32.totalorder %s10, 6
    %s17 = sphi 0, %s36
    %s18 = sphi 0, %s32
    %s19 = sphi 0, %s28
    %s20 = sphi 0, %s17
    %s21 = sphi 0, %s18
    %s22 = sphi 0, %s19
    %s23 = sphi 0, %s20
    %s24 = sphi 0, %s21
    %s25 = sphi 0, %s22
    %s41 = sphi 0, %s43
    %s44 = sphi 0, %s41
    %s45 = sphi 0, %s44
    %s61 = sphi 0, %s45
    %s69 = sphi 0, %s71
    %s72 = sphi 0, %s69
    %s73 = sphi 0, %s72
    %s89 = sphi 0, %s73
    %s97 = sphi 0, %s99
    %s100 = sphi 0, %s97
    %s101 = sphi 0, %s100
    %s117 = sphi 0, %s101
    %s125 = sphi 0, %s127
    %s128 = sphi 0, %s125
    %s129 = sphi 0, %s128
    %s145 = sphi 0, %s129
  $region4: #{_conv_block_impl.2} parent=0 // loop_header_branch
    %13 = sbr.rel (%p11) target = $region8
  $region5: #{_conv_block_impl.2} parent=0 // loop_body
    %s15 = ssub.s32 %s10, 1
    %s16 = ssub.s32 %s10, 2
    %s26 = sadd.s32 1, %s19
    %p27 = scmp.ge.s32.totalorder %s26, 1
    %s28 = scalar_select %p27, 0, %s26
    %s29 = sadd.s32 1, %s18
    %s30 = scalar_select %p27, %s29, %s18
    %p31 = scmp.ge.s32.totalorder %s30, 1
    %s32 = scalar_select %p31, 0, %s30
    %s33 = sadd.s32 1, %s17
    %s34 = scalar_select %p31, %s33, %s17
    %p35 = scmp.ge.s32.totalorder %s34, 4
    %s36 = scalar_select %p35, 0, %s34
    %s37 = ssub.s32 %s17, %s36
    %s38 = ssub.s32 %s19, %s28
    %s39 = sor.u32 %s37, %s38
    %p40 = scmp.eq.s32.totalorder %s39, 0
    %s42 = sadd.s32 %s41, 1
    %s43 = scalar_select %p40, %s41, %s42
    %p46 = pneg %p40
    %p47 = scmp.eq.s32.totalorder %s10, 3
    %p48 = por %p46, %p47
    %p49 = scmp.ne.s32.totalorder %s41, %s44
    %p50 = scmp.eq.s32.totalorder %s10, 0
    %p51 = por %p49, %p50
    %p52 = scmp.ne.s32.totalorder %s41, %s44
    %p53 = scmp.eq.s32.totalorder %s15, 3
    %p54 = por %p52, %p53
    %p55 = scmp.ne.s32.totalorder %s44, %s45
    %p56 = scmp.eq.s32.totalorder %s15, 0
    %p57 = por %p55, %p56
    %p58 = scmp.ne.s32.totalorder %s44, %s45
    %p59 = scmp.eq.s32.totalorder %s16, 3
    %p60 = por %p58, %p59
    %p62 = scmp.ne.s32.totalorder %s45, %s61
    %p63 = scmp.eq.s32.totalorder %s16, 0
    %p64 = por %p62, %p63
    %s65 = ssub.s32 %s19, %s28
    %s66 = ssub.s32 %s18, %s32
    %s67 = sor.u32 %s65, %s66
    %p68 = scmp.eq.s32.totalorder %s67, 0
    %s70 = sadd.s32 %s69, 1
    %s71 = scalar_select %p68, %s69, %s70
    %p74 = pneg %p68
    %p75 = scmp.eq.s32.totalorder %s10, 3
    %p76 = por %p74, %p75
    %p77 = scmp.ne.s32.totalorder %s69, %s72
    %p78 = scmp.eq.s32.totalorder %s10, 0
    %p79 = por %p77, %p78
    %p80 = scmp.ne.s32.totalorder %s69, %s72
    %p81 = scmp.eq.s32.totalorder %s15, 3
    %p82 = por %p80, %p81
    %p83 = scmp.ne.s32.totalorder %s72, %s73
    %p84 = scmp.eq.s32.totalorder %s15, 0
    %p85 = por %p83, %p84
    %p86 = scmp.ne.s32.totalorder %s72, %s73
    %p87 = scmp.eq.s32.totalorder %s16, 3
    %p88 = por %p86, %p87
    %p90 = scmp.ne.s32.totalorder %s73, %s89
    %p91 = scmp.eq.s32.totalorder %s16, 0
    %p92 = por %p90, %p91
    %s93 = ssub.s32 %s17, %s36
    %s94 = ssub.s32 %s18, %s32
    %s95 = sor.u32 %s93, %s94
    %p96 = scmp.eq.s32.totalorder %s95, 0
    %s98 = sadd.s32 %s97, 1
    %s99 = scalar_select %p96, %s97, %s98
    %p102 = pneg %p96
    %p103 = scmp.eq.s32.totalorder %s10, 3
    %p104 = por %p102, %p103
    %p105 = scmp.ne.s32.totalorder %s97, %s100
    %p106 = scmp.eq.s32.totalorder %s10, 0
    %p107 = por %p105, %p106
    %p108 = scmp.ne.s32.totalorder %s97, %s100
    %p109 = scmp.eq.s32.totalorder %s15, 3
    %p110 = por %p108, %p109
    %p111 = scmp.ne.s32.totalorder %s100, %s101
    %p112 = scmp.eq.s32.totalorder %s15, 0
    %p113 = por %p111, %p112
    %p114 = scmp.ne.s32.totalorder %s100, %s101
    %p115 = scmp.eq.s32.totalorder %s16, 3
    %p116 = por %p114, %p115
    %p118 = scmp.ne.s32.totalorder %s101, %s117
    %p119 = scmp.eq.s32.totalorder %s16, 0
    %p120 = por %p118, %p119
    %s121 = ssub.s32 %s17, %s36
    %s122 = ssub.s32 %s18, %s32
    %s123 = sor.u32 %s121, %s122
    %p124 = scmp.eq.s32.totalorder %s123, 0
    %s126 = sadd.s32 %s125, 1
    %s127 = scalar_select %p124, %s125, %s126
    %p130 = pneg %p124
    %p131 = scmp.eq.s32.totalorder %s10, 3
    %p132 = por %p130, %p131
    %p133 = scmp.ne.s32.totalorder %s125, %s128
    %p134 = scmp.eq.s32.totalorder %s10, 0
    %p135 = por %p133, %p134
    %p136 = scmp.ne.s32.totalorder %s125, %s128
    %p137 = scmp.eq.s32.totalorder %s15, 3
    %p138 = por %p136, %p137
    %p139 = scmp.ne.s32.totalorder %s128, %s129
    %p140 = scmp.eq.s32.totalorder %s15, 0
    %p141 = por %p139, %p140
    %p142 = scmp.ne.s32.totalorder %s128, %s129
    %p143 = scmp.eq.s32.totalorder %s16, 3
    %p144 = por %p142, %p143
    %p146 = scmp.ne.s32.totalorder %s129, %s145
    %p147 = scmp.eq.s32.totalorder %s16, 0
    %p148 = por %p146, %p147
    %p149 = scmp.le.s32.totalorder 1, %s10
    %p150 = scmp.lt.s32.totalorder %s10, 5
    %p151 = pnand %p149, %p150
    %p152 = pneg %p151
    // Predicated region
    $region9: #{_conv_block_impl.2} parent=5 // pred_check
      _
    $region10: #{_conv_block_impl.2} parent=5 // pred_check_branch
      %154 = sbr.rel (%p151) target = $region12
    $region11: #{_conv_block_impl.2} parent=5 // pred_region
      %s155 = ssub.s32 %s10, 1
      // Predicated region
      $region13: #{_conv_block_impl.2} parent=11 // pred_check
        %p156 = pneg %p85
      $region14: #{_conv_block_impl.2} parent=11 // pred_check_branch
        %158 = sbr.rel (%p156) target = $region16
      $region15: #{_conv_block_impl.2} parent=11 // pred_region
        %s159 = smul.u32 16, %s22
        %p160 = scmp.lt.s32.totalorder %s159, 15
        %s161 = scalar_select %p160, %s159, 15
        %p162 = scmp.lt.s32.totalorder %s21, 0
        %s163 = scalar_select %p162, %s21, 0
        %s164 = sadd.s32 %s163, %s161
        %s165 = smul.addr %s164, 4
        %s166 = scalar_lea.vmem %s1, %s165
        %s167 = smul.u32 16, %s22
      $region16: #{_conv_block_impl.2} parent=11 // pred_fallthru
        _
    $region12: #{_conv_block_impl.2} parent=5 // pred_fallthru
      _
    %p168 = scmp.lt.s32.totalorder %s10, 4
    // Predicated region
    $region17: #{_conv_block_impl.2} parent=5 // pred_check
      %p169 = pneg %p168
    $region18: #{_conv_block_impl.2} parent=5 // pred_check_branch
      %171 = sbr.rel (%p169) target = $region20
    $region19: #{_conv_block_impl.2} parent=5 // pred_region
      // Predicated region
      $region21: #{_conv_block_impl.2} parent=19 // pred_check
        %p172 = pneg %p51
      $region22: #{_conv_block_impl.2} parent=19 // pred_check_branch
        %174 = sbr.rel (%p172) target = $region24
      $region23: #{_conv_block_impl.2} parent=19 // pred_region
        %s175 = smul.u32 64, %s17
        %p176 = scmp.lt.s32.totalorder %s175, 255
        %s177 = scalar_select %p176, %s175, 255
        %p178 = scmp.lt.s32.totalorder %s19, 0
        %s179 = scalar_select %p178, %s19, 0
        %s180 = sadd.s32 %s179, %s177
        %s181 = smul.addr %s180, 4
        %s182 = scalar_lea.vmem %s0, %s181
        %s183 = smul.u32 64, %s17
      $region24: #{_conv_block_impl.2} parent=19 // pred_fallthru
        _
    $region20: #{_conv_block_impl.2} parent=5 // pred_fallthru
      _
    %p184 = scmp.le.s32.totalorder 1, %s10
    %p185 = scmp.lt.s32.totalorder %s10, 5
    %p186 = pnand %p184, %p185
    %p187 = pneg %p186
    // Predicated region
    $region25: #{_conv_block_impl.2} parent=5 // pred_check
      _
    $region26: #{_conv_block_impl.2} parent=5 // pred_check_branch
      %189 = sbr.rel (%p186) target = $region28
    $region27: #{_conv_block_impl.2} parent=5 // pred_region
      %s190 = ssub.s32 %s10, 1
      %s191 = smul.u32 64, %s20
      %p192 = scmp.lt.s32.totalorder %s191, 255
      %s193 = scalar_select %p192, %s191, 255
      %p194 = scmp.lt.s32.totalorder %s22, 0
      %s195 = scalar_select %p194, %s22, 0
      %s196 = sadd.s32 %s195, %s193
      %s197 = smul.addr %s196, 4
      %s198 = scalar_lea.vmem %s0, %s197
      %p199 = pneg %p57
      %p200 = pneg %p54
      %s201 = smul.u32 16, %s22
      %p202 = scmp.lt.s32.totalorder %s201, 15
      %s203 = scalar_select %p202, %s201, 15
      %p204 = scmp.lt.s32.totalorder %s21, 0
      %s205 = scalar_select %p204, %s21, 0
      %s206 = sadd.s32 %s205, %s203
      %s207 = smul.addr %s206, 4
      %s208 = scalar_lea.vmem %s1, %s207
      %p209 = pneg %p85
      %p210 = pneg %p82
      %p211 = pneg %p113
      %p212 = pneg %p110
      %s213 = smul.u32 64, %s20
      %p214 = scmp.lt.s32.totalorder %s213, 255
      %s215 = scalar_select %p214, %s213, 255
      %p216 = scmp.lt.s32.totalorder %s21, 0
      %s217 = scalar_select %p216, %s21, 0
      %s218 = sadd.s32 %s217, %s215
      %s219 = smul.addr %s218, 8
      %s220 = scalar_lea.vmem %s2, %s219
      %p221 = pneg %p141
      %p222 = pneg %p138
      %p223 = scmp.lt.s32.totalorder %s20, 3
      %s224 = scalar_select %p223, %s20, 3
      %p225 = scmp.lt.s32.totalorder %s21, 0
      %s226 = scalar_select %p225, %s21, 0
      %s227 = sadd.s32 %s226, %s224
      %s228 = smul.addr %s227, 8
      %s229 = scalar_lea.vmem %s3, %s228
      %s230 = smul.u32 64, %s20
      %p231 = scmp.lt.s32.totalorder %s230, 255
      %s232 = scalar_select %p231, %s230, 255
      %p233 = scmp.lt.s32.totalorder %s22, 0
      %s234 = scalar_select %p233, %s22, 0
      %s235 = sadd.s32 %s234, %s232
      %s236 = smul.addr %s235, 4
      %s237 = scalar_lea.vmem %s0, %s236
      %s238 = smul.u32 64, %s20
      %s239 = smul.u32 16, %s22
      %p240 = scmp.lt.s32.totalorder %s239, 15
      %s241 = scalar_select %p240, %s239, 15
      %p242 = scmp.lt.s32.totalorder %s21, 0
      %s243 = scalar_select %p242, %s21, 0
      %s244 = sadd.s32 %s243, %s241
      %s245 = smul.addr %s244, 4
      %s246 = scalar_lea.vmem %s1, %s245
      %s247 = smul.u32 16, %s22
      %s248 = smul.u32 64, %s20
      %p249 = scmp.lt.s32.totalorder %s248, 255
      %s250 = scalar_select %p249, %s248, 255
      %p251 = scmp.lt.s32.totalorder %s21, 0
      %s252 = scalar_select %p251, %s21, 0
      %s253 = sadd.s32 %s252, %s250
      %s254 = smul.addr %s253, 8
      %s255 = scalar_lea.vmem %s2, %s254
      %s256 = smul.u32 64, %s20
      %p257 = scmp.lt.s32.totalorder %s20, 3
      %s258 = scalar_select %p257, %s20, 3
      %p259 = scmp.lt.s32.totalorder %s21, 0
      %s260 = scalar_select %p259, %s21, 0
      %s261 = sadd.s32 %s260, %s258
      %s262 = smul.addr %s261, 8
      %s263 = scalar_lea.vmem %s3, %s262
      %p265 = scmp.eq.s32.totalorder %s22, 0
      // Predicated region
      $region29: #{_conv_block_impl.2} parent=27 // pred_check
        %p266 = pneg %p265
      $region30: #{_conv_block_impl.2} parent=27 // pred_check_branch
        %268 = sbr.rel (%p266) target = $region32
      $region31: #{_conv_block_impl.2} parent=27 // pred_region
        %269 = vst [vmem:[%s255] sm:$0xff] 0.0
        %270 = vst [vmem:[%s255 + $0x8] sm:$0xff] 0.0
        %271 = vst [vmem:[%s255 + $0x10] sm:$0xff] 0.0
        %272 = vst [vmem:[%s255 + $0x18] sm:$0xff] 0.0
        %273 = vst [vmem:[%s255 + $0x20] sm:$0xff] 0.0
        %274 = vst [vmem:[%s255 + $0x28] sm:$0xff] 0.0
        %275 = vst [vmem:[%s255 + $0x30] sm:$0xff] 0.0
        %276 = vst [vmem:[%s255 + $0x38] sm:$0xff] 0.0
        %277 = vst [vmem:[%s255 + $0x40] sm:$0xff] 0.0
        %278 = vst [vmem:[%s255 + $0x48] sm:$0xff] 0.0
        %279 = vst [vmem:[%s255 + $0x50] sm:$0xff] 0.0
        %280 = vst [vmem:[%s255 + $0x58] sm:$0xff] 0.0
        %281 = vst [vmem:[%s255 + $0x60] sm:$0xff] 0.0
        %282 = vst [vmem:[%s255 + $0x68] sm:$0xff] 0.0
        %283 = vst [vmem:[%s255 + $0x70] sm:$0xff] 0.0
        %284 = vst [vmem:[%s255 + $0x78] sm:$0xff] 0.0
        %285 = vst [vmem:[%s255 + $0x80] sm:$0xff] 0.0
        %286 = vst [vmem:[%s255 + $0x88] sm:$0xff] 0.0
        %287 = vst [vmem:[%s255 + $0x90] sm:$0xff] 0.0
        %288 = vst [vmem:[%s255 + $0x98] sm:$0xff] 0.0
        %289 = vst [vmem:[%s255 + $0xa0] sm:$0xff] 0.0
        %290 = vst [vmem:[%s255 + $0xa8] sm:$0xff] 0.0
        %291 = vst [vmem:[%s255 + $0xb0] sm:$0xff] 0.0
        %292 = vst [vmem:[%s255 + $0xb8] sm:$0xff] 0.0
        %293 = vst [vmem:[%s255 + $0xc0] sm:$0xff] 0.0
        %294 = vst [vmem:[%s255 + $0xc8] sm:$0xff] 0.0
        %295 = vst [vmem:[%s255 + $0xd0] sm:$0xff] 0.0
        %296 = vst [vmem:[%s255 + $0xd8] sm:$0xff] 0.0
        %297 = vst [vmem:[%s255 + $0xe0] sm:$0xff] 0.0
        %298 = vst [vmem:[%s255 + $0xe8] sm:$0xff] 0.0
        %299 = vst [vmem:[%s255 + $0xf0] sm:$0xff] 0.0
        %300 = vst [vmem:[%s255 + $0xf8] sm:$0xff] 0.0
        %301 = vst [vmem:[%s255 + $0x100] sm:$0xff] 0.0
        %302 = vst [vmem:[%s255 + $0x108] sm:$0xff] 0.0
        %303 = vst [vmem:[%s255 + $0x110] sm:$0xff] 0.0
        %304 = vst [vmem:[%s255 + $0x118] sm:$0xff] 0.0
        %305 = vst [vmem:[%s255 + $0x120] sm:$0xff] 0.0
        %306 = vst [vmem:[%s255 + $0x128] sm:$0xff] 0.0
        %307 = vst [vmem:[%s255 + $0x130] sm:$0xff] 0.0
        %308 = vst [vmem:[%s255 + $0x138] sm:$0xff] 0.0
        %309 = vst [vmem:[%s255 + $0x140] sm:$0xff] 0.0
        %310 = vst [vmem:[%s255 + $0x148] sm:$0xff] 0.0
        %311 = vst [vmem:[%s255 + $0x150] sm:$0xff] 0.0
        %312 = vst [vmem:[%s255 + $0x158] sm:$0xff] 0.0
        %313 = vst [vmem:[%s255 + $0x160] sm:$0xff] 0.0
        %314 = vst [vmem:[%s255 + $0x168] sm:$0xff] 0.0
        %315 = vst [vmem:[%s255 + $0x170] sm:$0xff] 0.0
        %316 = vst [vmem:[%s255 + $0x178] sm:$0xff] 0.0
        %317 = vst [vmem:[%s255 + $0x180] sm:$0xff] 0.0
        %318 = vst [vmem:[%s255 + $0x188] sm:$0xff] 0.0
        %319 = vst [vmem:[%s255 + $0x190] sm:$0xff] 0.0
        %320 = vst [vmem:[%s255 + $0x198] sm:$0xff] 0.0
        %321 = vst [vmem:[%s255 + $0x1a0] sm:$0xff] 0.0
        %322 = vst [vmem:[%s255 + $0x1a8] sm:$0xff] 0.0
        %323 = vst [vmem:[%s255 + $0x1b0] sm:$0xff] 0.0
        %324 = vst [vmem:[%s255 + $0x1b8] sm:$0xff] 0.0
        %325 = vst [vmem:[%s255 + $0x1c0] sm:$0xff] 0.0
        %326 = vst [vmem:[%s255 + $0x1c8] sm:$0xff] 0.0
        %327 = vst [vmem:[%s255 + $0x1d0] sm:$0xff] 0.0
        %328 = vst [vmem:[%s255 + $0x1d8] sm:$0xff] 0.0
        %329 = vst [vmem:[%s255 + $0x1e0] sm:$0xff] 0.0
        %330 = vst [vmem:[%s255 + $0x1e8] sm:$0xff] 0.0
        %331 = vst [vmem:[%s255 + $0x1f0] sm:$0xff] 0.0
        %332 = vst [vmem:[%s255 + $0x1f8] sm:$0xff] 0.0
      $region32: #{_conv_block_impl.2} parent=27 // pred_fallthru
        _
      %v333 = vld [vmem:[%s255] sm:$0xff]
      %v334 = vld [vmem:[%s255 + $0x8] sm:$0xff]
      %v335 = vld [vmem:[%s255 + $0x10] sm:$0xff]
      %v336 = vld [vmem:[%s255 + $0x18] sm:$0xff]
      %v337 = vld [vmem:[%s255 + $0x20] sm:$0xff]
      %v338 = vld [vmem:[%s255 + $0x28] sm:$0xff]
      %v339 = vld [vmem:[%s255 + $0x30] sm:$0xff]
      %v340 = vld [vmem:[%s255 + $0x38] sm:$0xff]
      %v341 = vld [vmem:[%s255 + $0x40] sm:$0xff]
      %v342 = vld [vmem:[%s255 + $0x48] sm:$0xff]
      %v343 = vld [vmem:[%s255 + $0x50] sm:$0xff]
      %v344 = vld [vmem:[%s255 + $0x58] sm:$0xff]
      %v345 = vld [vmem:[%s255 + $0x60] sm:$0xff]
      %v346 = vld [vmem:[%s255 + $0x68] sm:$0xff]
      %v347 = vld [vmem:[%s255 + $0x70] sm:$0xff]
      %v348 = vld [vmem:[%s255 + $0x78] sm:$0xff]
      %v349 = vld [vmem:[%s255 + $0x80] sm:$0xff]
      %v350 = vld [vmem:[%s255 + $0x88] sm:$0xff]
      %v351 = vld [vmem:[%s255 + $0x90] sm:$0xff]
      %v352 = vld [vmem:[%s255 + $0x98] sm:$0xff]
      %v353 = vld [vmem:[%s255 + $0xa0] sm:$0xff]
      %v354 = vld [vmem:[%s255 + $0xa8] sm:$0xff]
      %v355 = vld [vmem:[%s255 + $0xb0] sm:$0xff]
      %v356 = vld [vmem:[%s255 + $0xb8] sm:$0xff]
      %v357 = vld [vmem:[%s255 + $0xc0] sm:$0xff]
      %v358 = vld [vmem:[%s255 + $0xc8] sm:$0xff]
      %v359 = vld [vmem:[%s255 + $0xd0] sm:$0xff]
      %v360 = vld [vmem:[%s255 + $0xd8] sm:$0xff]
      %v361 = vld [vmem:[%s255 + $0xe0] sm:$0xff]
      %v362 = vld [vmem:[%s255 + $0xe8] sm:$0xff]
      %v363 = vld [vmem:[%s255 + $0xf0] sm:$0xff]
      %v364 = vld [vmem:[%s255 + $0xf8] sm:$0xff]
      %v365 = vld [vmem:[%s255 + $0x100] sm:$0xff]
      %v366 = vld [vmem:[%s255 + $0x108] sm:$0xff]
      %v367 = vld [vmem:[%s255 + $0x110] sm:$0xff]
      %v368 = vld [vmem:[%s255 + $0x118] sm:$0xff]
      %v369 = vld [vmem:[%s255 + $0x120] sm:$0xff]
      %v370 = vld [vmem:[%s255 + $0x128] sm:$0xff]
      %v371 = vld [vmem:[%s255 + $0x130] sm:$0xff]
      %v372 = vld [vmem:[%s255 + $0x138] sm:$0xff]
      %v373 = vld [vmem:[%s255 + $0x140] sm:$0xff]
      %v374 = vld [vmem:[%s255 + $0x148] sm:$0xff]
      %v375 = vld [vmem:[%s255 + $0x150] sm:$0xff]
      %v376 = vld [vmem:[%s255 + $0x158] sm:$0xff]
      %v377 = vld [vmem:[%s255 + $0x160] sm:$0xff]
      %v378 = vld [vmem:[%s255 + $0x168] sm:$0xff]
      %v379 = vld [vmem:[%s255 + $0x170] sm:$0xff]
      %v380 = vld [vmem:[%s255 + $0x178] sm:$0xff]
      %v381 = vld [vmem:[%s255 + $0x180] sm:$0xff]
      %v382 = vld [vmem:[%s255 + $0x188] sm:$0xff]
      %v383 = vld [vmem:[%s255 + $0x190] sm:$0xff]
      %v384 = vld [vmem:[%s255 + $0x198] sm:$0xff]
      %v385 = vld [vmem:[%s255 + $0x1a0] sm:$0xff]
      %v386 = vld [vmem:[%s255 + $0x1a8] sm:$0xff]
      %v387 = vld [vmem:[%s255 + $0x1b0] sm:$0xff]
      %v388 = vld [vmem:[%s255 + $0x1b8] sm:$0xff]
      %v389 = vld [vmem:[%s255 + $0x1c0] sm:$0xff]
      %v390 = vld [vmem:[%s255 + $0x1c8] sm:$0xff]
      %v391 = vld [vmem:[%s255 + $0x1d0] sm:$0xff]
      %v392 = vld [vmem:[%s255 + $0x1d8] sm:$0xff]
      %v393 = vld [vmem:[%s255 + $0x1e0] sm:$0xff]
      %v394 = vld [vmem:[%s255 + $0x1e8] sm:$0xff]
      %v395 = vld [vmem:[%s255 + $0x1f0] sm:$0xff]
      %v396 = vld [vmem:[%s255 + $0x1f8] sm:$0xff]
      %v397 = vld [vmem:[%s237] sm:$0xf]
      %v398 = vld [vmem:[%s237 + $0x4] sm:$0xf]
      %v399 = vld [vmem:[%s237 + $0x8] sm:$0xf]
      %v400 = vld [vmem:[%s237 + $0xc] sm:$0xf]
      %v401 = vld [vmem:[%s237 + $0x10] sm:$0xf]
      %v402 = vld [vmem:[%s237 + $0x14] sm:$0xf]
      %v403 = vld [vmem:[%s237 + $0x18] sm:$0xf]
      %v404 = vld [vmem:[%s237 + $0x1c] sm:$0xf]
      %v405 = vld [vmem:[%s237 + $0x20] sm:$0xf]
      %v406 = vld [vmem:[%s237 + $0x24] sm:$0xf]
      %v407 = vld [vmem:[%s237 + $0x28] sm:$0xf]
      %v408 = vld [vmem:[%s237 + $0x2c] sm:$0xf]
      %v409 = vld [vmem:[%s237 + $0x30] sm:$0xf]
      %v410 = vld [vmem:[%s237 + $0x34] sm:$0xf]
      %v411 = vld [vmem:[%s237 + $0x38] sm:$0xf]
      %v412 = vld [vmem:[%s237 + $0x3c] sm:$0xf]
      %v413 = vld [vmem:[%s237 + $0x40] sm:$0xf]
      %v414 = vld [vmem:[%s237 + $0x44] sm:$0xf]
      %v415 = vld [vmem:[%s237 + $0x48] sm:$0xf]
      %v416 = vld [vmem:[%s237 + $0x4c] sm:$0xf]
      %v417 = vld [vmem:[%s237 + $0x50] sm:$0xf]
      %v418 = vld [vmem:[%s237 + $0x54] sm:$0xf]
      %v419 = vld [vmem:[%s237 + $0x58] sm:$0xf]
      %v420 = vld [vmem:[%s237 + $0x5c] sm:$0xf]
      %v421 = vld [vmem:[%s237 + $0x60] sm:$0xf]
      %v422 = vld [vmem:[%s237 + $0x64] sm:$0xf]
      %v423 = vld [vmem:[%s237 + $0x68] sm:$0xf]
      %v424 = vld [vmem:[%s237 + $0x6c] sm:$0xf]
      %v425 = vld [vmem:[%s237 + $0x70] sm:$0xf]
      %v426 = vld [vmem:[%s237 + $0x74] sm:$0xf]
      %v427 = vld [vmem:[%s237 + $0x78] sm:$0xf]
      %v428 = vld [vmem:[%s237 + $0x7c] sm:$0xf]
      %v429 = vld [vmem:[%s237 + $0x80] sm:$0xf]
      %v430 = vld [vmem:[%s237 + $0x84] sm:$0xf]
      %v431 = vld [vmem:[%s237 + $0x88] sm:$0xf]
      %v432 = vld [vmem:[%s237 + $0x8c] sm:$0xf]
      %v433 = vld [vmem:[%s237 + $0x90] sm:$0xf]
      %v434 = vld [vmem:[%s237 + $0x94] sm:$0xf]
      %v435 = vld [vmem:[%s237 + $0x98] sm:$0xf]
      %v436 = vld [vmem:[%s237 + $0x9c] sm:$0xf]
      %v437 = vld [vmem:[%s237 + $0xa0] sm:$0xf]
      %v438 = vld [vmem:[%s237 + $0xa4] sm:$0xf]
      %v439 = vld [vmem:[%s237 + $0xa8] sm:$0xf]
      %v440 = vld [vmem:[%s237 + $0xac] sm:$0xf]
      %v441 = vld [vmem:[%s237 + $0xb0] sm:$0xf]
      %v442 = vld [vmem:[%s237 + $0xb4] sm:$0xf]
      %v443 = vld [vmem:[%s237 + $0xb8] sm:$0xf]
      %v444 = vld [vmem:[%s237 + $0xbc] sm:$0xf]
      %v445 = vld [vmem:[%s237 + $0xc0] sm:$0xf]
      %v446 = vld [vmem:[%s237 + $0xc4] sm:$0xf]
      %v447 = vld [vmem:[%s237 + $0xc8] sm:$0xf]
      %v448 = vld [vmem:[%s237 + $0xcc] sm:$0xf]
      %v449 = vld [vmem:[%s237 + $0xd0] sm:$0xf]
      %v450 = vld [vmem:[%s237 + $0xd4] sm:$0xf]
      %v451 = vld [vmem:[%s237 + $0xd8] sm:$0xf]
      %v452 = vld [vmem:[%s237 + $0xdc] sm:$0xf]
      %v453 = vld [vmem:[%s237 + $0xe0] sm:$0xf]
      %v454 = vld [vmem:[%s237 + $0xe4] sm:$0xf]
      %v455 = vld [vmem:[%s237 + $0xe8] sm:$0xf]
      %v456 = vld [vmem:[%s237 + $0xec] sm:$0xf]
      %v457 = vld [vmem:[%s237 + $0xf0] sm:$0xf]
      %v458 = vld [vmem:[%s237 + $0xf4] sm:$0xf]
      %v459 = vld [vmem:[%s237 + $0xf8] sm:$0xf]
      %v460 = vld [vmem:[%s237 + $0xfc] sm:$0xf]
      %v461 = vld [vmem:[%s246] sm:$0xf]
      %v462 = vld [vmem:[%s246 + $0x4] sm:$0xf]
      %v463 = vld [vmem:[%s246 + $0x8] sm:$0xf]
      %v464 = vld [vmem:[%s246 + $0xc] sm:$0xf]
      %v465 = vld [vmem:[%s246 + $0x10] sm:$0xf]
      %v466 = vld [vmem:[%s246 + $0x14] sm:$0xf]
      %v467 = vld [vmem:[%s246 + $0x18] sm:$0xf]
      %v468 = vld [vmem:[%s246 + $0x1c] sm:$0xf]
      %v469 = vld [vmem:[%s246 + $0x20] sm:$0xf]
      %v470 = vld [vmem:[%s246 + $0x24] sm:$0xf]
      %v471 = vld [vmem:[%s246 + $0x28] sm:$0xf]
      %v472 = vld [vmem:[%s246 + $0x2c] sm:$0xf]
      %v473 = vld [vmem:[%s246 + $0x30] sm:$0xf]
      %v474 = vld [vmem:[%s246 + $0x34] sm:$0xf]
      %v475 = vld [vmem:[%s246 + $0x38] sm:$0xf]
      %v476 = vld [vmem:[%s246 + $0x3c] sm:$0xf]
      %v541 = vunpack.c.l.b16 %v397
      %v542 = vunpack.c.l.b16 %v398
      %v543 = vunpack.c.l.b16 %v399
      %v544 = vunpack.c.l.b16 %v400
      %v545 = vunpack.c.l.b16 %v401
      %v546 = vunpack.c.l.b16 %v402
      %v547 = vunpack.c.l.b16 %v403
      %v548 = vunpack.c.l.b16 %v404
      %v549 = vunpack.c.l.b16 %v405
      %v550 = vunpack.c.l.b16 %v406
      %v551 = vunpack.c.l.b16 %v407
      %v552 = vunpack.c.l.b16 %v408
      %v553 = vunpack.c.l.b16 %v409
      %v554 = vunpack.c.l.b16 %v410
      %v555 = vunpack.c.l.b16 %v411
      %v556 = vunpack.c.l.b16 %v412
      %v557 = vunpack.c.l.b16 %v413
      %v558 = vunpack.c.l.b16 %v414
      %v559 = vunpack.c.l.b16 %v415
      %v560 = vunpack.c.l.b16 %v416
      %v561 = vunpack.c.l.b16 %v417
      %v562 = vunpack.c.l.b16 %v418
      %v563 = vunpack.c.l.b16 %v419
      %v564 = vunpack.c.l.b16 %v420
      %v565 = vunpack.c.l.b16 %v421
      %v566 = vunpack.c.l.b16 %v422
      %v567 = vunpack.c.l.b16 %v423
      %v568 = vunpack.c.l.b16 %v424
      %v569 = vunpack.c.l.b16 %v425
      %v570 = vunpack.c.l.b16 %v426
      %v571 = vunpack.c.l.b16 %v427
      %v572 = vunpack.c.l.b16 %v428
      %v573 = vunpack.c.l.b16 %v429
      %v574 = vunpack.c.l.b16 %v430
      %v575 = vunpack.c.l.b16 %v431
      %v576 = vunpack.c.l.b16 %v432
      %v577 = vunpack.c.l.b16 %v433
      %v578 = vunpack.c.l.b16 %v434
      %v579 = vunpack.c.l.b16 %v435
      %v580 = vunpack.c.l.b16 %v436
      %v581 = vunpack.c.l.b16 %v437
      %v582 = vunpack.c.l.b16 %v438
      %v583 = vunpack.c.l.b16 %v439
      %v584 = vunpack.c.l.b16 %v440
      %v585 = vunpack.c.l.b16 %v441
      %v586 = vunpack.c.l.b16 %v442
      %v587 = vunpack.c.l.b16 %v443
      %v588 = vunpack.c.l.b16 %v444
      %v589 = vunpack.c.l.b16 %v445
      %v590 = vunpack.c.l.b16 %v446
      %v591 = vunpack.c.l.b16 %v447
      %v592 = vunpack.c.l.b16 %v448
      %v593 = vunpack.c.l.b16 %v449
      %v594 = vunpack.c.l.b16 %v450
      %v595 = vunpack.c.l.b16 %v451
      %v596 = vunpack.c.l.b16 %v452
      %v597 = vunpack.c.l.b16 %v453
      %v598 = vunpack.c.l.b16 %v454
      %v599 = vunpack.c.l.b16 %v455
      %v600 = vunpack.c.l.b16 %v456
      %v601 = vunpack.c.l.b16 %v457
      %v602 = vunpack.c.l.b16 %v458
      %v603 = vunpack.c.l.b16 %v459
      %v604 = vunpack.c.l.b16 %v460
      %v605 = vpack.c.b16 %v542, %v541
      %v606 = vpack.c.b16 %v544, %v543
      %v607 = vpack.c.b16 %v546, %v545
      %v608 = vpack.c.b16 %v548, %v547
      %v609 = vpack.c.b16 %v550, %v549
      %v610 = vpack.c.b16 %v552, %v551
      %v611 = vpack.c.b16 %v554, %v553
      %v612 = vpack.c.b16 %v556, %v555
      %v613 = vpack.c.b16 %v558, %v557
      %v614 = vpack.c.b16 %v560, %v559
      %v615 = vpack.c.b16 %v562, %v561
      %v616 = vpack.c.b16 %v564, %v563
      %v617 = vpack.c.b16 %v566, %v565
      %v618 = vpack.c.b16 %v568, %v567
      %v619 = vpack.c.b16 %v570, %v569
      %v620 = vpack.c.b16 %v572, %v571
      %v621 = vpack.c.b16 %v574, %v573
      %v622 = vpack.c.b16 %v576, %v575
      %v623 = vpack.c.b16 %v578, %v577
      %v624 = vpack.c.b16 %v580, %v579
      %v625 = vpack.c.b16 %v582, %v581
      %v626 = vpack.c.b16 %v584, %v583
      %v627 = vpack.c.b16 %v586, %v585
      %v628 = vpack.c.b16 %v588, %v587
      %v629 = vpack.c.b16 %v590, %v589
      %v630 = vpack.c.b16 %v592, %v591
      %v631 = vpack.c.b16 %v594, %v593
      %v632 = vpack.c.b16 %v596, %v595
      %v633 = vpack.c.b16 %v598, %v597
      %v634 = vpack.c.b16 %v600, %v599
      %v635 = vpack.c.b16 %v602, %v601
      %v636 = vpack.c.b16 %v604, %v603
      %v685 = vunpack.c.l.b16 %v461
      %v686 = vunpack.c.l.b16 %v462
      %v687 = vunpack.c.l.b16 %v463
      %v688 = vunpack.c.l.b16 %v464
      %v689 = vunpack.c.l.b16 %v465
      %v690 = vunpack.c.l.b16 %v466
      %v691 = vunpack.c.l.b16 %v467
      %v692 = vunpack.c.l.b16 %v468
      %v693 = vunpack.c.l.b16 %v469
      %v694 = vunpack.c.l.b16 %v470
      %v695 = vunpack.c.l.b16 %v471
      %v696 = vunpack.c.l.b16 %v472
      %v697 = vunpack.c.l.b16 %v473
      %v698 = vunpack.c.l.b16 %v474
      %v699 = vunpack.c.l.b16 %v475
      %v700 = vunpack.c.l.b16 %v476
      %v701 = vpack.c.b16 %v686, %v685
      %v702 = vpack.c.b16 %v688, %v687
      %v703 = vpack.c.b16 %v690, %v689
      %v704 = vpack.c.b16 %v692, %v691
      %v705 = vpack.c.b16 %v694, %v693
      %v706 = vpack.c.b16 %v696, %v695
      %v707 = vpack.c.b16 %v698, %v697
      %v708 = vpack.c.b16 %v700, %v699
      %717 = vmatprep.subr.bf16.mxu0 0
      %718 = vmatpush1.bf16.msra.mxu0 %v708
      %719 = vmatprep.subr.bf16.mxu0 0
      %720 = vmatpush1.bf16.msra.mxu0 %v707
      %721 = vmatprep.subr.bf16.mxu0 0
      %722 = vmatpush1.bf16.msra.mxu0 %v706
      %723 = vmatprep.subr.bf16.mxu0 0
      %724 = vmatpush1.bf16.msra.mxu0 %v705
      %725 = vmatprep.subr.bf16.mxu0 0
      %726 = vmatpush1.bf16.msra.mxu0 %v704
      %727 = vmatprep.subr.bf16.mxu0 0
      %728 = vmatpush1.bf16.msra.mxu0 %v703
      %729 = vmatprep.subr.bf16.mxu0 0
      %730 = vmatpush1.bf16.msra.mxu0 %v702
      %731 = vmatprep.subr.bf16.mxu0 0
      %732 = vmatpush1.bf16.msra.mxu0 %v701
      %733 = vmatprep.subr.bf16.mxu0 0
      %734 = vmatpush2.bf16.msra.mxu0 0
      %735 = vmatprep.subr.bf16.mxu0 0
      %736 = vmatpush2.bf16.msra.mxu0 0
      %737 = vmatprep.subr.bf16.mxu0 0
      %738 = vmatpush2.bf16.msra.mxu0 0
      %739 = vmatprep.subr.bf16.mxu0 0
      %740 = vmatpush2.bf16.msra.mxu0 0
      %741 = vmatprep.subr.bf16.mxu0 0
      %742 = vmatpush2.bf16.msra.mxu0 0
      %743 = vmatprep.subr.bf16.mxu0 0
      %744 = vmatpush2.bf16.msra.mxu0 0
      %745 = vmatprep.subr.bf16.mxu0 0
      %746 = vmatpush2.bf16.msra.mxu0 0
      %747 = vmatprep.subr.bf16.mxu0 0
      %748 = vmatpush2.bf16.msra.mxu0 0
      %749 = vmatprep.mubr.bf16.mxu0 0
      %750 = vmatmul.mubr.bf16.gmra.mxu0 %v605
      %v751 = vpop.f32.mrf.mxu0
      %v752 = vadd.f32 0.0, %v751
      %v753 = vpop.f32.mrf.mxu0
      %v754 = vpop.f32.mrf.mxu0
      %v755 = vadd.f32 0.0, %v754
      %v756 = vpop.f32.mrf.mxu0
      %757 = vmatprep.mubr.bf16.mxu0 0
      %758 = vmatmul.mubr.bf16.gmra.mxu0 %v606
      %v759 = vpop.f32.mrf.mxu0
      %v760 = vadd.f32 0.0, %v759
      %v761 = vpop.f32.mrf.mxu0
      %v762 = vpop.f32.mrf.mxu0
      %v763 = vadd.f32 0.0, %v762
      %v764 = vpop.f32.mrf.mxu0
      %765 = vmatprep.mubr.bf16.mxu0 0
      %766 = vmatmul.mubr.bf16.gmra.mxu0 %v607
      %v767 = vpop.f32.mrf.mxu0
      %v768 = vadd.f32 0.0, %v767
      %v769 = vpop.f32.mrf.mxu0
      %v770 = vpop.f32.mrf.mxu0
      %v771 = vadd.f32 0.0, %v770
      %v772 = vpop.f32.mrf.mxu0
      %773 = vmatprep.mubr.bf16.mxu0 0
      %774 = vmatmul.mubr.bf16.gmra.mxu0 %v608
      %v775 = vpop.f32.mrf.mxu0
      %v776 = vadd.f32 0.0, %v775
      %v777 = vpop.f32.mrf.mxu0
      %v778 = vpop.f32.mrf.mxu0
      %v779 = vadd.f32 0.0, %v778
      %v780 = vpop.f32.mrf.mxu0
      %781 = vmatprep.mubr.bf16.mxu0 0
      %782 = vmatmul.mubr.bf16.gmra.mxu0 %v609
      %v783 = vpop.f32.mrf.mxu0
      %v784 = vadd.f32 0.0, %v783
      %v785 = vpop.f32.mrf.mxu0
      %v786 = vpop.f32.mrf.mxu0
      %v787 = vadd.f32 0.0, %v786
      %v788 = vpop.f32.mrf.mxu0
      %789 = vmatprep.mubr.bf16.mxu0 0
      %790 = vmatmul.mubr.bf16.gmra.mxu0 %v610
      %v791 = vpop.f32.mrf.mxu0
      %v792 = vadd.f32 0.0, %v791
      %v793 = vpop.f32.mrf.mxu0
      %v794 = vpop.f32.mrf.mxu0
      %v795 = vadd.f32 0.0, %v794
      %v796 = vpop.f32.mrf.mxu0
      %797 = vmatprep.mubr.bf16.mxu0 0
      %798 = vmatmul.mubr.bf16.gmra.mxu0 %v611
      %v799 = vpop.f32.mrf.mxu0
      %v800 = vadd.f32 0.0, %v799
      %v801 = vpop.f32.mrf.mxu0
      %v802 = vpop.f32.mrf.mxu0
      %v803 = vadd.f32 0.0, %v802
      %v804 = vpop.f32.mrf.mxu0
      %805 = vmatprep.mubr.bf16.mxu0 0
      %806 = vmatmul.mubr.bf16.gmra.mxu0 %v612
      %v807 = vpop.f32.mrf.mxu0
      %v808 = vadd.f32 0.0, %v807
      %v809 = vpop.f32.mrf.mxu0
      %v810 = vpop.f32.mrf.mxu0
      %v811 = vadd.f32 0.0, %v810
      %v812 = vpop.f32.mrf.mxu0
      %813 = vmatprep.mubr.bf16.mxu0 0
      %814 = vmatmul.mubr.bf16.gmra.mxu0 %v613
      %v815 = vpop.f32.mrf.mxu0
      %v816 = vadd.f32 0.0, %v815
      %v817 = vpop.f32.mrf.mxu0
      %v818 = vpop.f32.mrf.mxu0
      %v819 = vadd.f32 0.0, %v818
      %v820 = vpop.f32.mrf.mxu0
      %821 = vmatprep.mubr.bf16.mxu0 0
      %822 = vmatmul.mubr.bf16.gmra.mxu0 %v614
      %v823 = vpop.f32.mrf.mxu0
      %v824 = vadd.f32 0.0, %v823
      %v825 = vpop.f32.mrf.mxu0
      %v826 = vpop.f32.mrf.mxu0
      %v827 = vadd.f32 0.0, %v826
      %v828 = vpop.f32.mrf.mxu0
      %829 = vmatprep.mubr.bf16.mxu0 0
      %830 = vmatmul.mubr.bf16.gmra.mxu0 %v615
      %v831 = vpop.f32.mrf.mxu0
      %v832 = vadd.f32 0.0, %v831
      %v833 = vpop.f32.mrf.mxu0
      %v834 = vpop.f32.mrf.mxu0
      %v835 = vadd.f32 0.0, %v834
      %v836 = vpop.f32.mrf.mxu0
      %837 = vmatprep.mubr.bf16.mxu0 0
      %838 = vmatmul.mubr.bf16.gmra.mxu0 %v616
      %v839 = vpop.f32.mrf.mxu0
      %v840 = vadd.f32 0.0, %v839
      %v841 = vpop.f32.mrf.mxu0
      %v842 = vpop.f32.mrf.mxu0
      %v843 = vadd.f32 0.0, %v842
      %v844 = vpop.f32.mrf.mxu0
      %845 = vmatprep.mubr.bf16.mxu0 0
      %846 = vmatmul.mubr.bf16.gmra.mxu0 %v617
      %v847 = vpop.f32.mrf.mxu0
      %v848 = vadd.f32 0.0, %v847
      %v849 = vpop.f32.mrf.mxu0
      %v850 = vpop.f32.mrf.mxu0
      %v851 = vadd.f32 0.0, %v850
      %v852 = vpop.f32.mrf.mxu0
      %853 = vmatprep.mubr.bf16.mxu0 0
      %854 = vmatmul.mubr.bf16.gmra.mxu0 %v618
      %v855 = vpop.f32.mrf.mxu0
      %v856 = vadd.f32 0.0, %v855
      %v857 = vpop.f32.mrf.mxu0
      %v858 = vpop.f32.mrf.mxu0
      %v859 = vadd.f32 0.0, %v858
      %v860 = vpop.f32.mrf.mxu0
      %861 = vmatprep.mubr.bf16.mxu0 0
      %862 = vmatmul.mubr.bf16.gmra.mxu0 %v619
      %v863 = vpop.f32.mrf.mxu0
      %v864 = vadd.f32 0.0, %v863
      %v865 = vpop.f32.mrf.mxu0
      %v866 = vpop.f32.mrf.mxu0
      %v867 = vadd.f32 0.0, %v866
      %v868 = vpop.f32.mrf.mxu0
      %869 = vmatprep.mubr.bf16.mxu0 0
      %870 = vmatmul.mubr.bf16.gmra.mxu0 %v620
      %v871 = vpop.f32.mrf.mxu0
      %v872 = vadd.f32 0.0, %v871
      %v873 = vpop.f32.mrf.mxu0
      %v874 = vpop.f32.mrf.mxu0
      %v875 = vadd.f32 0.0, %v874
      %v876 = vpop.f32.mrf.mxu0
      %877 = vmatprep.mubr.bf16.mxu0 0
      %878 = vmatmul.mubr.bf16.gmra.mxu0 %v621
      %v879 = vpop.f32.mrf.mxu0
      %v880 = vadd.f32 0.0, %v879
      %v881 = vpop.f32.mrf.mxu0
      %v882 = vpop.f32.mrf.mxu0
      %v883 = vadd.f32 0.0, %v882
      %v884 = vpop.f32.mrf.mxu0
      %885 = vmatprep.mubr.bf16.mxu0 0
      %886 = vmatmul.mubr.bf16.gmra.mxu0 %v622
      %v887 = vpop.f32.mrf.mxu0
      %v888 = vadd.f32 0.0, %v887
      %v889 = vpop.f32.mrf.mxu0
      %v890 = vpop.f32.mrf.mxu0
      %v891 = vadd.f32 0.0, %v890
      %v892 = vpop.f32.mrf.mxu0
      %893 = vmatprep.mubr.bf16.mxu0 0
      %894 = vmatmul.mubr.bf16.gmra.mxu0 %v623
      %v895 = vpop.f32.mrf.mxu0
      %v896 = vadd.f32 0.0, %v895
      %v897 = vpop.f32.mrf.mxu0
      %v898 = vpop.f32.mrf.mxu0
      %v899 = vadd.f32 0.0, %v898
      %v900 = vpop.f32.mrf.mxu0
      %901 = vmatprep.mubr.bf16.mxu0 0
      %902 = vmatmul.mubr.bf16.gmra.mxu0 %v624
      %v903 = vpop.f32.mrf.mxu0
      %v904 = vadd.f32 0.0, %v903
      %v905 = vpop.f32.mrf.mxu0
      %v906 = vpop.f32.mrf.mxu0
      %v907 = vadd.f32 0.0, %v906
      %v908 = vpop.f32.mrf.mxu0
      %909 = vmatprep.mubr.bf16.mxu0 0
      %910 = vmatmul.mubr.bf16.gmra.mxu0 %v625
      %v911 = vpop.f32.mrf.mxu0
      %v912 = vadd.f32 0.0, %v911
      %v913 = vpop.f32.mrf.mxu0
      %v914 = vpop.f32.mrf.mxu0
      %v915 = vadd.f32 0.0, %v914
      %v916 = vpop.f32.mrf.mxu0
      %917 = vmatprep.mubr.bf16.mxu0 0
      %918 = vmatmul.mubr.bf16.gmra.mxu0 %v626
      %v919 = vpop.f32.mrf.mxu0
      %v920 = vadd.f32 0.0, %v919
      %v921 = vpop.f32.mrf.mxu0
      %v922 = vpop.f32.mrf.mxu0
      %v923 = vadd.f32 0.0, %v922
      %v924 = vpop.f32.mrf.mxu0
      %925 = vmatprep.mubr.bf16.mxu0 0
      %926 = vmatmul.mubr.bf16.gmra.mxu0 %v627
      %v927 = vpop.f32.mrf.mxu0
      %v928 = vadd.f32 0.0, %v927
      %v929 = vpop.f32.mrf.mxu0
      %v930 = vpop.f32.mrf.mxu0
      %v931 = vadd.f32 0.0, %v930
      %v932 = vpop.f32.mrf.mxu0
      %933 = vmatprep.mubr.bf16.mxu0 0
      %934 = vmatmul.mubr.bf16.gmra.mxu0 %v628
      %v935 = vpop.f32.mrf.mxu0
      %v936 = vadd.f32 0.0, %v935
      %v937 = vpop.f32.mrf.mxu0
      %v938 = vpop.f32.mrf.mxu0
      %v939 = vadd.f32 0.0, %v938
      %v940 = vpop.f32.mrf.mxu0
      %941 = vmatprep.mubr.bf16.mxu0 0
      %942 = vmatmul.mubr.bf16.gmra.mxu0 %v629
      %v943 = vpop.f32.mrf.mxu0
      %v944 = vadd.f32 0.0, %v943
      %v945 = vpop.f32.mrf.mxu0
      %v946 = vpop.f32.mrf.mxu0
      %v947 = vadd.f32 0.0, %v946
      %v948 = vpop.f32.mrf.mxu0
      %949 = vmatprep.mubr.bf16.mxu0 0
      %950 = vmatmul.mubr.bf16.gmra.mxu0 %v630
      %v951 = vpop.f32.mrf.mxu0
      %v952 = vadd.f32 0.0, %v951
      %v953 = vpop.f32.mrf.mxu0
      %v954 = vpop.f32.mrf.mxu0
      %v955 = vadd.f32 0.0, %v954
      %v956 = vpop.f32.mrf.mxu0
      %957 = vmatprep.mubr.bf16.mxu0 0
      %958 = vmatmul.mubr.bf16.gmra.mxu0 %v631
      %v959 = vpop.f32.mrf.mxu0
      %v960 = vadd.f32 0.0, %v959
      %v961 = vpop.f32.mrf.mxu0
      %v962 = vpop.f32.mrf.mxu0
      %v963 = vadd.f32 0.0, %v962
      %v964 = vpop.f32.mrf.mxu0
      %965 = vmatprep.mubr.bf16.mxu0 0
      %966 = vmatmul.mubr.bf16.gmra.mxu0 %v632
      %v967 = vpop.f32.mrf.mxu0
      %v968 = vadd.f32 0.0, %v967
      %v969 = vpop.f32.mrf.mxu0
      %v970 = vpop.f32.mrf.mxu0
      %v971 = vadd.f32 0.0, %v970
      %v972 = vpop.f32.mrf.mxu0
      %973 = vmatprep.mubr.bf16.mxu0 0
      %974 = vmatmul.mubr.bf16.gmra.mxu0 %v633
      %v975 = vpop.f32.mrf.mxu0
      %v976 = vadd.f32 0.0, %v975
      %v977 = vpop.f32.mrf.mxu0
      %v978 = vpop.f32.mrf.mxu0
      %v979 = vadd.f32 0.0, %v978
      %v980 = vpop.f32.mrf.mxu0
      %981 = vmatprep.mubr.bf16.mxu0 0
      %982 = vmatmul.mubr.bf16.gmra.mxu0 %v634
      %v983 = vpop.f32.mrf.mxu0
      %v984 = vadd.f32 0.0, %v983
      %v985 = vpop.f32.mrf.mxu0
      %v986 = vpop.f32.mrf.mxu0
      %v987 = vadd.f32 0.0, %v986
      %v988 = vpop.f32.mrf.mxu0
      %989 = vmatprep.mubr.bf16.mxu0 0
      %990 = vmatmul.mubr.bf16.gmra.mxu0 %v635
      %v991 = vpop.f32.mrf.mxu0
      %v992 = vadd.f32 0.0, %v991
      %v993 = vpop.f32.mrf.mxu0
      %v994 = vpop.f32.mrf.mxu0
      %v995 = vadd.f32 0.0, %v994
      %v996 = vpop.f32.mrf.mxu0
      %997 = vmatprep.mubr.bf16.mxu0 0
      %998 = vmatmul.mubr.bf16.gmra.mxu0 %v636
      %v999 = vpop.f32.mrf.mxu0
      %v1000 = vadd.f32 0.0, %v999
      %v1001 = vpop.f32.mrf.mxu0
      %v1002 = vpop.f32.mrf.mxu0
      %v1003 = vadd.f32 0.0, %v1002
      %v1004 = vpop.f32.mrf.mxu0
      %1005 = vdwg.mxu0
      %v1006 = vadd.f32 %v333, %v752
      %v1007 = vadd.f32 %v334, %v755
      %v1008 = vadd.f32 %v335, %v760
      %v1009 = vadd.f32 %v336, %v763
      %v1010 = vadd.f32 %v337, %v768
      %v1011 = vadd.f32 %v338, %v771
      %v1012 = vadd.f32 %v339, %v776
      %v1013 = vadd.f32 %v340, %v779
      %v1014 = vadd.f32 %v341, %v784
      %v1015 = vadd.f32 %v342, %v787
      %v1016 = vadd.f32 %v343, %v792
      %v1017 = vadd.f32 %v344, %v795
      %v1018 = vadd.f32 %v345, %v800
      %v1019 = vadd.f32 %v346, %v803
      %v1020 = vadd.f32 %v347, %v808
      %v1021 = vadd.f32 %v348, %v811
      %v1022 = vadd.f32 %v349, %v816
      %v1023 = vadd.f32 %v350, %v819
      %v1024 = vadd.f32 %v351, %v824
      %v1025 = vadd.f32 %v352, %v827
      %v1026 = vadd.f32 %v353, %v832
      %v1027 = vadd.f32 %v354, %v835
      %v1028 = vadd.f32 %v355, %v840
      %v1029 = vadd.f32 %v356, %v843
      %v1030 = vadd.f32 %v357, %v848
      %v1031 = vadd.f32 %v358, %v851
      %v1032 = vadd.f32 %v359, %v856
      %v1033 = vadd.f32 %v360, %v859
      %v1034 = vadd.f32 %v361, %v864
      %v1035 = vadd.f32 %v362, %v867
      %v1036 = vadd.f32 %v363, %v872
      %v1037 = vadd.f32 %v364, %v875
      %v1038 = vadd.f32 %v365, %v880
      %v1039 = vadd.f32 %v366, %v883
      %v1040 = vadd.f32 %v367, %v888
      %v1041 = vadd.f32 %v368, %v891
      %v1042 = vadd.f32 %v369, %v896
      %v1043 = vadd.f32 %v370, %v899
      %v1044 = vadd.f32 %v371, %v904
      %v1045 = vadd.f32 %v372, %v907
      %v1046 = vadd.f32 %v373, %v912
      %v1047 = vadd.f32 %v374, %v915
      %v1048 = vadd.f32 %v375, %v920
      %v1049 = vadd.f32 %v376, %v923
      %v1050 = vadd.f32 %v377, %v928
      %v1051 = vadd.f32 %v378, %v931
      %v1052 = vadd.f32 %v379, %v936
      %v1053 = vadd.f32 %v380, %v939
      %v1054 = vadd.f32 %v381, %v944
      %v1055 = vadd.f32 %v382, %v947
      %v1056 = vadd.f32 %v383, %v952
      %v1057 = vadd.f32 %v384, %v955
      %v1058 = vadd.f32 %v385, %v960
      %v1059 = vadd.f32 %v386, %v963
      %v1060 = vadd.f32 %v387, %v968
      %v1061 = vadd.f32 %v388, %v971
      %v1062 = vadd.f32 %v389, %v976
      %v1063 = vadd.f32 %v390, %v979
      %v1064 = vadd.f32 %v391, %v984
      %v1065 = vadd.f32 %v392, %v987
      %v1066 = vadd.f32 %v393, %v992
      %v1067 = vadd.f32 %v394, %v995
      %v1068 = vadd.f32 %v395, %v1000
      %v1069 = vadd.f32 %v396, %v1003
      %1070 = vst [vmem:[%s255] sm:$0xff] %v1006
      %1071 = vst [vmem:[%s255 + $0x8] sm:$0xff] %v1007
      %1072 = vst [vmem:[%s255 + $0x10] sm:$0xff] %v1008
      %1073 = vst [vmem:[%s255 + $0x18] sm:$0xff] %v1009
      %1074 = vst [vmem:[%s255 + $0x20] sm:$0xff] %v1010
      %1075 = vst [vmem:[%s255 + $0x28] sm:$0xff] %v1011
      %1076 = vst [vmem:[%s255 + $0x30] sm:$0xff] %v1012
      %1077 = vst [vmem:[%s255 + $0x38] sm:$0xff] %v1013
      %1078 = vst [vmem:[%s255 + $0x40] sm:$0xff] %v1014
      %1079 = vst [vmem:[%s255 + $0x48] sm:$0xff] %v1015
      %1080 = vst [vmem:[%s255 + $0x50] sm:$0xff] %v1016
      %1081 = vst [vmem:[%s255 + $0x58] sm:$0xff] %v1017
      %1082 = vst [vmem:[%s255 + $0x60] sm:$0xff] %v1018
      %1083 = vst [vmem:[%s255 + $0x68] sm:$0xff] %v1019
      %1084 = vst [vmem:[%s255 + $0x70] sm:$0xff] %v1020
      %1085 = vst [vmem:[%s255 + $0x78] sm:$0xff] %v1021
      %1086 = vst [vmem:[%s255 + $0x80] sm:$0xff] %v1022
      %1087 = vst [vmem:[%s255 + $0x88] sm:$0xff] %v1023
      %1088 = vst [vmem:[%s255 + $0x90] sm:$0xff] %v1024
      %1089 = vst [vmem:[%s255 + $0x98] sm:$0xff] %v1025
      %1090 = vst [vmem:[%s255 + $0xa0] sm:$0xff] %v1026
      %1091 = vst [vmem:[%s255 + $0xa8] sm:$0xff] %v1027
      %1092 = vst [vmem:[%s255 + $0xb0] sm:$0xff] %v1028
      %1093 = vst [vmem:[%s255 + $0xb8] sm:$0xff] %v1029
      %1094 = vst [vmem:[%s255 + $0xc0] sm:$0xff] %v1030
      %1095 = vst [vmem:[%s255 + $0xc8] sm:$0xff] %v1031
      %1096 = vst [vmem:[%s255 + $0xd0] sm:$0xff] %v1032
      %1097 = vst [vmem:[%s255 + $0xd8] sm:$0xff] %v1033
      %1098 = vst [vmem:[%s255 + $0xe0] sm:$0xff] %v1034
      %1099 = vst [vmem:[%s255 + $0xe8] sm:$0xff] %v1035
      %1100 = vst [vmem:[%s255 + $0xf0] sm:$0xff] %v1036
      %1101 = vst [vmem:[%s255 + $0xf8] sm:$0xff] %v1037
      %1102 = vst [vmem:[%s255 + $0x100] sm:$0xff] %v1038
      %1103 = vst [vmem:[%s255 + $0x108] sm:$0xff] %v1039
      %1104 = vst [vmem:[%s255 + $0x110] sm:$0xff] %v1040
      %1105 = vst [vmem:[%s255 + $0x118] sm:$0xff] %v1041
      %1106 = vst [vmem:[%s255 + $0x120] sm:$0xff] %v1042
      %1107 = vst [vmem:[%s255 + $0x128] sm:$0xff] %v1043
      %1108 = vst [vmem:[%s255 + $0x130] sm:$0xff] %v1044
      %1109 = vst [vmem:[%s255 + $0x138] sm:$0xff] %v1045
      %1110 = vst [vmem:[%s255 + $0x140] sm:$0xff] %v1046
      %1111 = vst [vmem:[%s255 + $0x148] sm:$0xff] %v1047
      %1112 = vst [vmem:[%s255 + $0x150] sm:$0xff] %v1048
      %1113 = vst [vmem:[%s255 + $0x158] sm:$0xff] %v1049
      %1114 = vst [vmem:[%s255 + $0x160] sm:$0xff] %v1050
      %1115 = vst [vmem:[%s255 + $0x168] sm:$0xff] %v1051
      %1116 = vst [vmem:[%s255 + $0x170] sm:$0xff] %v1052
      %1117 = vst [vmem:[%s255 + $0x178] sm:$0xff] %v1053
      %1118 = vst [vmem:[%s255 + $0x180] sm:$0xff] %v1054
      %1119 = vst [vmem:[%s255 + $0x188] sm:$0xff] %v1055
      %1120 = vst [vmem:[%s255 + $0x190] sm:$0xff] %v1056
      %1121 = vst [vmem:[%s255 + $0x198] sm:$0xff] %v1057
      %1122 = vst [vmem:[%s255 + $0x1a0] sm:$0xff] %v1058
      %1123 = vst [vmem:[%s255 + $0x1a8] sm:$0xff] %v1059
      %1124 = vst [vmem:[%s255 + $0x1b0] sm:$0xff] %v1060
      %1125 = vst [vmem:[%s255 + $0x1b8] sm:$0xff] %v1061
      %1126 = vst [vmem:[%s255 + $0x1c0] sm:$0xff] %v1062
      %1127 = vst [vmem:[%s255 + $0x1c8] sm:$0xff] %v1063
      %1128 = vst [vmem:[%s255 + $0x1d0] sm:$0xff] %v1064
      %1129 = vst [vmem:[%s255 + $0x1d8] sm:$0xff] %v1065
      %1130 = vst [vmem:[%s255 + $0x1e0] sm:$0xff] %v1066
      %1131 = vst [vmem:[%s255 + $0x1e8] sm:$0xff] %v1067
      %1132 = vst [vmem:[%s255 + $0x1f0] sm:$0xff] %v1068
      %1133 = vst [vmem:[%s255 + $0x1f8] sm:$0xff] %v1069
      // Predicated region
      $region33: #{_conv_block_impl.2} parent=27 // pred_check
        %p1134 = pneg %p265
      $region34: #{_conv_block_impl.2} parent=27 // pred_check_branch
        %1136 = sbr.rel (%p1134) target = $region36
      $region35: #{_conv_block_impl.2} parent=27 // pred_region
        %v1137 = vld [vmem:[%s255] sm:$0xff]
        %v1138 = vld [vmem:[%s255 + $0x8] sm:$0xff]
        %v1139 = vld [vmem:[%s255 + $0x10] sm:$0xff]
        %v1140 = vld [vmem:[%s255 + $0x18] sm:$0xff]
        %v1141 = vld [vmem:[%s255 + $0x20] sm:$0xff]
        %v1142 = vld [vmem:[%s255 + $0x28] sm:$0xff]
        %v1143 = vld [vmem:[%s255 + $0x30] sm:$0xff]
        %v1144 = vld [vmem:[%s255 + $0x38] sm:$0xff]
        %v1145 = vld [vmem:[%s255 + $0x40] sm:$0xff]
        %v1146 = vld [vmem:[%s255 + $0x48] sm:$0xff]
        %v1147 = vld [vmem:[%s255 + $0x50] sm:$0xff]
        %v1148 = vld [vmem:[%s255 + $0x58] sm:$0xff]
        %v1149 = vld [vmem:[%s255 + $0x60] sm:$0xff]
        %v1150 = vld [vmem:[%s255 + $0x68] sm:$0xff]
        %v1151 = vld [vmem:[%s255 + $0x70] sm:$0xff]
        %v1152 = vld [vmem:[%s255 + $0x78] sm:$0xff]
        %v1153 = vld [vmem:[%s255 + $0x80] sm:$0xff]
        %v1154 = vld [vmem:[%s255 + $0x88] sm:$0xff]
        %v1155 = vld [vmem:[%s255 + $0x90] sm:$0xff]
        %v1156 = vld [vmem:[%s255 + $0x98] sm:$0xff]
        %v1157 = vld [vmem:[%s255 + $0xa0] sm:$0xff]
        %v1158 = vld [vmem:[%s255 + $0xa8] sm:$0xff]
        %v1159 = vld [vmem:[%s255 + $0xb0] sm:$0xff]
        %v1160 = vld [vmem:[%s255 + $0xb8] sm:$0xff]
        %v1161 = vld [vmem:[%s255 + $0xc0] sm:$0xff]
        %v1162 = vld [vmem:[%s255 + $0xc8] sm:$0xff]
        %v1163 = vld [vmem:[%s255 + $0xd0] sm:$0xff]
        %v1164 = vld [vmem:[%s255 + $0xd8] sm:$0xff]
        %v1165 = vld [vmem:[%s255 + $0xe0] sm:$0xff]
        %v1166 = vld [vmem:[%s255 + $0xe8] sm:$0xff]
        %v1167 = vld [vmem:[%s255 + $0xf0] sm:$0xff]
        %v1168 = vld [vmem:[%s255 + $0xf8] sm:$0xff]
        %v1169 = vld [vmem:[%s255 + $0x100] sm:$0xff]
        %v1170 = vld [vmem:[%s255 + $0x108] sm:$0xff]
        %v1171 = vld [vmem:[%s255 + $0x110] sm:$0xff]
        %v1172 = vld [vmem:[%s255 + $0x118] sm:$0xff]
        %v1173 = vld [vmem:[%s255 + $0x120] sm:$0xff]
        %v1174 = vld [vmem:[%s255 + $0x128] sm:$0xff]
        %v1175 = vld [vmem:[%s255 + $0x130] sm:$0xff]
        %v1176 = vld [vmem:[%s255 + $0x138] sm:$0xff]
        %v1177 = vld [vmem:[%s255 + $0x140] sm:$0xff]
        %v1178 = vld [vmem:[%s255 + $0x148] sm:$0xff]
        %v1179 = vld [vmem:[%s255 + $0x150] sm:$0xff]
        %v1180 = vld [vmem:[%s255 + $0x158] sm:$0xff]
        %v1181 = vld [vmem:[%s255 + $0x160] sm:$0xff]
        %v1182 = vld [vmem:[%s255 + $0x168] sm:$0xff]
        %v1183 = vld [vmem:[%s255 + $0x170] sm:$0xff]
        %v1184 = vld [vmem:[%s255 + $0x178] sm:$0xff]
        %v1185 = vld [vmem:[%s255 + $0x180] sm:$0xff]
        %v1186 = vld [vmem:[%s255 + $0x188] sm:$0xff]
        %v1187 = vld [vmem:[%s255 + $0x190] sm:$0xff]
        %v1188 = vld [vmem:[%s255 + $0x198] sm:$0xff]
        %v1189 = vld [vmem:[%s255 + $0x1a0] sm:$0xff]
        %v1190 = vld [vmem:[%s255 + $0x1a8] sm:$0xff]
        %v1191 = vld [vmem:[%s255 + $0x1b0] sm:$0xff]
        %v1192 = vld [vmem:[%s255 + $0x1b8] sm:$0xff]
        %v1193 = vld [vmem:[%s255 + $0x1c0] sm:$0xff]
        %v1194 = vld [vmem:[%s255 + $0x1c8] sm:$0xff]
        %v1195 = vld [vmem:[%s255 + $0x1d0] sm:$0xff]
        %v1196 = vld [vmem:[%s255 + $0x1d8] sm:$0xff]
        %v1197 = vld [vmem:[%s255 + $0x1e0] sm:$0xff]
        %v1198 = vld [vmem:[%s255 + $0x1e8] sm:$0xff]
        %v1199 = vld [vmem:[%s255 + $0x1f0] sm:$0xff]
        %v1200 = vld [vmem:[%s255 + $0x1f8] sm:$0xff]
        %v1201 = vadd.f32 %v1137, %v1138
        %v1202 = vadd.f32 %v1201, %v1139
        %v1203 = vadd.f32 %v1202, %v1140
        %v1204 = vadd.f32 %v1203, %v1141
        %v1205 = vadd.f32 %v1204, %v1142
        %v1206 = vadd.f32 %v1205, %v1143
        %v1207 = vadd.f32 %v1206, %v1144
        %v1208 = vadd.f32 %v1207, %v1145
        %v1209 = vadd.f32 %v1208, %v1146
        %v1210 = vadd.f32 %v1209, %v1147
        %v1211 = vadd.f32 %v1210, %v1148
        %v1212 = vadd.f32 %v1211, %v1149
        %v1213 = vadd.f32 %v1212, %v1150
        %v1214 = vadd.f32 %v1213, %v1151
        %v1215 = vadd.f32 %v1214, %v1152
        %v1216 = vadd.f32 %v1215, %v1153
        %v1217 = vadd.f32 %v1216, %v1154
        %v1218 = vadd.f32 %v1217, %v1155
        %v1219 = vadd.f32 %v1218, %v1156
        %v1220 = vadd.f32 %v1219, %v1157
        %v1221 = vadd.f32 %v1220, %v1158
        %v1222 = vadd.f32 %v1221, %v1159
        %v1223 = vadd.f32 %v1222, %v1160
        %v1224 = vadd.f32 %v1223, %v1161
        %v1225 = vadd.f32 %v1224, %v1162
        %v1226 = vadd.f32 %v1225, %v1163
        %v1227 = vadd.f32 %v1226, %v1164
        %v1228 = vadd.f32 %v1227, %v1165
        %v1229 = vadd.f32 %v1228, %v1166
        %v1230 = vadd.f32 %v1229, %v1167
        %v1231 = vadd.f32 %v1230, %v1168
        %v1232 = vadd.f32 %v1231, %v1169
        %v1233 = vadd.f32 %v1232, %v1170
        %v1234 = vadd.f32 %v1233, %v1171
        %v1235 = vadd.f32 %v1234, %v1172
        %v1236 = vadd.f32 %v1235, %v1173
        %v1237 = vadd.f32 %v1236, %v1174
        %v1238 = vadd.f32 %v1237, %v1175
        %v1239 = vadd.f32 %v1238, %v1176
        %v1240 = vadd.f32 %v1239, %v1177
        %v1241 = vadd.f32 %v1240, %v1178
        %v1242 = vadd.f32 %v1241, %v1179
        %v1243 = vadd.f32 %v1242, %v1180
        %v1244 = vadd.f32 %v1243, %v1181
        %v1245 = vadd.f32 %v1244, %v1182
        %v1246 = vadd.f32 %v1245, %v1183
        %v1247 = vadd.f32 %v1246, %v1184
        %v1248 = vadd.f32 %v1247, %v1185
        %v1249 = vadd.f32 %v1248, %v1186
        %v1250 = vadd.f32 %v1249, %v1187
        %v1251 = vadd.f32 %v1250, %v1188
        %v1252 = vadd.f32 %v1251, %v1189
        %v1253 = vadd.f32 %v1252, %v1190
        %v1254 = vadd.f32 %v1253, %v1191
        %v1255 = vadd.f32 %v1254, %v1192
        %v1256 = vadd.f32 %v1255, %v1193
        %v1257 = vadd.f32 %v1256, %v1194
        %v1258 = vadd.f32 %v1257, %v1195
        %v1259 = vadd.f32 %v1258, %v1196
        %v1260 = vadd.f32 %v1259, %v1197
        %v1261 = vadd.f32 %v1260, %v1198
        %v1262 = vadd.f32 %v1261, %v1199
        %v1263 = vadd.f32 %v1262, %v1200
        %v1264 = vrot.slane %v1263, 4
        %v1265 = vadd.f32 %v1263, %v1264
        %v1266 = vrot.slane %v1265, 2
        %v1267 = vadd.f32 %v1265, %v1266
        %v1268 = vrot.slane %v1267, 1
        %v1269 = vadd.f32 %v1267, %v1268
        %v1270 = vmul.f32 %v1137, %v1137
        %v1271 = vmul.f32 %v1138, %v1138
        %v1272 = vmul.f32 %v1139, %v1139
        %v1273 = vmul.f32 %v1140, %v1140
        %v1274 = vmul.f32 %v1141, %v1141
        %v1275 = vmul.f32 %v1142, %v1142
        %v1276 = vmul.f32 %v1143, %v1143
        %v1277 = vmul.f32 %v1144, %v1144
        %v1278 = vmul.f32 %v1145, %v1145
        %v1279 = vmul.f32 %v1146, %v1146
        %v1280 = vmul.f32 %v1147, %v1147
        %v1281 = vmul.f32 %v1148, %v1148
        %v1282 = vmul.f32 %v1149, %v1149
        %v1283 = vmul.f32 %v1150, %v1150
        %v1284 = vmul.f32 %v1151, %v1151
        %v1285 = vmul.f32 %v1152, %v1152
        %v1286 = vmul.f32 %v1153, %v1153
        %v1287 = vmul.f32 %v1154, %v1154
        %v1288 = vmul.f32 %v1155, %v1155
        %v1289 = vmul.f32 %v1156, %v1156
        %v1290 = vmul.f32 %v1157, %v1157
        %v1291 = vmul.f32 %v1158, %v1158
        %v1292 = vmul.f32 %v1159, %v1159
        %v1293 = vmul.f32 %v1160, %v1160
        %v1294 = vmul.f32 %v1161, %v1161
        %v1295 = vmul.f32 %v1162, %v1162
        %v1296 = vmul.f32 %v1163, %v1163
        %v1297 = vmul.f32 %v1164, %v1164
        %v1298 = vmul.f32 %v1165, %v1165
        %v1299 = vmul.f32 %v1166, %v1166
        %v1300 = vmul.f32 %v1167, %v1167
        %v1301 = vmul.f32 %v1168, %v1168
        %v1302 = vmul.f32 %v1169, %v1169
        %v1303 = vmul.f32 %v1170, %v1170
        %v1304 = vmul.f32 %v1171, %v1171
        %v1305 = vmul.f32 %v1172, %v1172
        %v1306 = vmul.f32 %v1173, %v1173
        %v1307 = vmul.f32 %v1174, %v1174
        %v1308 = vmul.f32 %v1175, %v1175
        %v1309 = vmul.f32 %v1176, %v1176
        %v1310 = vmul.f32 %v1177, %v1177
        %v1311 = vmul.f32 %v1178, %v1178
        %v1312 = vmul.f32 %v1179, %v1179
        %v1313 = vmul.f32 %v1180, %v1180
        %v1314 = vmul.f32 %v1181, %v1181
        %v1315 = vmul.f32 %v1182, %v1182
        %v1316 = vmul.f32 %v1183, %v1183
        %v1317 = vmul.f32 %v1184, %v1184
        %v1318 = vmul.f32 %v1185, %v1185
        %v1319 = vmul.f32 %v1186, %v1186
        %v1320 = vmul.f32 %v1187, %v1187
        %v1321 = vmul.f32 %v1188, %v1188
        %v1322 = vmul.f32 %v1189, %v1189
        %v1323 = vmul.f32 %v1190, %v1190
        %v1324 = vmul.f32 %v1191, %v1191
        %v1325 = vmul.f32 %v1192, %v1192
        %v1326 = vmul.f32 %v1193, %v1193
        %v1327 = vmul.f32 %v1194, %v1194
        %v1328 = vmul.f32 %v1195, %v1195
        %v1329 = vmul.f32 %v1196, %v1196
        %v1330 = vmul.f32 %v1197, %v1197
        %v1331 = vmul.f32 %v1198, %v1198
        %v1332 = vmul.f32 %v1199, %v1199
        %v1333 = vmul.f32 %v1200, %v1200
        %v1334 = vadd.f32 %v1270, %v1271
        %v1335 = vadd.f32 %v1334, %v1272
        %v1336 = vadd.f32 %v1335, %v1273
        %v1337 = vadd.f32 %v1336, %v1274
        %v1338 = vadd.f32 %v1337, %v1275
        %v1339 = vadd.f32 %v1338, %v1276
        %v1340 = vadd.f32 %v1339, %v1277
        %v1341 = vadd.f32 %v1340, %v1278
        %v1342 = vadd.f32 %v1341, %v1279
        %v1343 = vadd.f32 %v1342, %v1280
        %v1344 = vadd.f32 %v1343, %v1281
        %v1345 = vadd.f32 %v1344, %v1282
        %v1346 = vadd.f32 %v1345, %v1283
        %v1347 = vadd.f32 %v1346, %v1284
        %v1348 = vadd.f32 %v1347, %v1285
        %v1349 = vadd.f32 %v1348, %v1286
        %v1350 = vadd.f32 %v1349, %v1287
        %v1351 = vadd.f32 %v1350, %v1288
        %v1352 = vadd.f32 %v1351, %v1289
        %v1353 = vadd.f32 %v1352, %v1290
        %v1354 = vadd.f32 %v1353, %v1291
        %v1355 = vadd.f32 %v1354, %v1292
        %v1356 = vadd.f32 %v1355, %v1293
        %v1357 = vadd.f32 %v1356, %v1294
        %v1358 = vadd.f32 %v1357, %v1295
        %v1359 = vadd.f32 %v1358, %v1296
        %v1360 = vadd.f32 %v1359, %v1297
        %v1361 = vadd.f32 %v1360, %v1298
        %v1362 = vadd.f32 %v1361, %v1299
        %v1363 = vadd.f32 %v1362, %v1300
        %v1364 = vadd.f32 %v1363, %v1301
        %v1365 = vadd.f32 %v1364, %v1302
        %v1366 = vadd.f32 %v1365, %v1303
        %v1367 = vadd.f32 %v1366, %v1304
        %v1368 = vadd.f32 %v1367, %v1305
        %v1369 = vadd.f32 %v1368, %v1306
        %v1370 = vadd.f32 %v1369, %v1307
        %v1371 = vadd.f32 %v1370, %v1308
        %v1372 = vadd.f32 %v1371, %v1309
        %v1373 = vadd.f32 %v1372, %v1310
        %v1374 = vadd.f32 %v1373, %v1311
        %v1375 = vadd.f32 %v1374, %v1312
        %v1376 = vadd.f32 %v1375, %v1313
        %v1377 = vadd.f32 %v1376, %v1314
        %v1378 = vadd.f32 %v1377, %v1315
        %v1379 = vadd.f32 %v1378, %v1316
        %v1380 = vadd.f32 %v1379, %v1317
        %v1381 = vadd.f32 %v1380, %v1318
        %v1382 = vadd.f32 %v1381, %v1319
        %v1383 = vadd.f32 %v1382, %v1320
        %v1384 = vadd.f32 %v1383, %v1321
        %v1385 = vadd.f32 %v1384, %v1322
        %v1386 = vadd.f32 %v1385, %v1323
        %v1387 = vadd.f32 %v1386, %v1324
        %v1388 = vadd.f32 %v1387, %v1325
        %v1389 = vadd.f32 %v1388, %v1326
        %v1390 = vadd.f32 %v1389, %v1327
        %v1391 = vadd.f32 %v1390, %v1328
        %v1392 = vadd.f32 %v1391, %v1329
        %v1393 = vadd.f32 %v1392, %v1330
        %v1394 = vadd.f32 %v1393, %v1331
        %v1395 = vadd.f32 %v1394, %v1332
        %v1396 = vadd.f32 %v1395, %v1333
        %v1397 = vrot.slane %v1396, 4
        %v1398 = vadd.f32 %v1396, %v1397
        %v1399 = vrot.slane %v1398, 2
        %v1400 = vadd.f32 %v1398, %v1399
        %v1401 = vrot.slane %v1400, 1
        %v1402 = vadd.f32 %v1400, %v1401
        %v1403 = vlaneseq
        %v1404 = vshrl.u32 %v1403, 7
        %vm1405 = vcmp.eq.s32.totalorder %v1404, 0
        %vm1406 = vcmp.eq.s32.totalorder %v1404, 1
        %v1407 = vsel %vm1406, %v1402, 0.0
        %v1408 = vsel %vm1405, %v1269, %v1407
        %1409 = vst [vmem:[%s263] sm:$0xff] %v1408
      $region36: #{_conv_block_impl.2} parent=27 // pred_fallthru
        _
      %s1410 = smul.u32 64, %s20
      %p1411 = scmp.lt.s32.totalorder %s1410, 255
      %s1412 = scalar_select %p1411, %s1410, 255
      %p1413 = scmp.lt.s32.totalorder %s21, 0
      %s1414 = scalar_select %p1413, %s21, 0
      %s1415 = sadd.s32 %s1414, %s1412
      %s1416 = smul.addr %s1415, 8
      %s1417 = scalar_lea.vmem %s2, %s1416
      %p1418 = scmp.lt.s32.totalorder %s20, 3
      %s1419 = scalar_select %p1418, %s20, 3
      %p1420 = scmp.lt.s32.totalorder %s21, 0
      %s1421 = scalar_select %p1420, %s21, 0
      %s1422 = sadd.s32 %s1421, %s1419
      %s1423 = smul.addr %s1422, 8
      %s1424 = scalar_lea.vmem %s3, %s1423
      // Predicated region
      $region37: #{_conv_block_impl.2} parent=27 // pred_check
        %p1425 = pneg %p110
      $region38: #{_conv_block_impl.2} parent=27 // pred_check_branch
        %1427 = sbr.rel (%p1425) target = $region40
      $region39: #{_conv_block_impl.2} parent=27 // pred_region
        %s1428 = smul.u32 64, %s20
      $region40: #{_conv_block_impl.2} parent=27 // pred_fallthru
        _
      // Predicated region
      $region41: #{_conv_block_impl.2} parent=27 // pred_check
        %p1429 = pneg %p138
      $region42: #{_conv_block_impl.2} parent=27 // pred_check_branch
        %1431 = sbr.rel (%p1429) target = $region44
      $region43: #{_conv_block_impl.2} parent=27 // pred_region
        _
      $region44: #{_conv_block_impl.2} parent=27 // pred_fallthru
        _
    $region28: #{_conv_block_impl.2} parent=5 // pred_fallthru
      _
    %p1432 = scmp.le.s32.totalorder 2, %s10
    // Predicated region
    $region45: #{_conv_block_impl.2} parent=5 // pred_check
      %p1433 = pneg %p1432
    $region46: #{_conv_block_impl.2} parent=5 // pred_check_branch
      %1435 = sbr.rel (%p1433) target = $region48
    $region47: #{_conv_block_impl.2} parent=5 // pred_region
      %s1436 = ssub.s32 %s10, 2
      // Predicated region
      $region49: #{_conv_block_impl.2} parent=47 // pred_check
        %p1437 = pneg %p116
      $region50: #{_conv_block_impl.2} parent=47 // pred_check_branch
        %1439 = sbr.rel (%p1437) target = $region52
      $region51: #{_conv_block_impl.2} parent=47 // pred_region
        %s1440 = smul.u32 64, %s23
        %p1441 = scmp.lt.s32.totalorder %s1440, 255
        %s1442 = scalar_select %p1441, %s1440, 255
        %p1443 = scmp.lt.s32.totalorder %s24, 0
        %s1444 = scalar_select %p1443, %s24, 0
        %s1445 = sadd.s32 %s1444, %s1442
        %s1446 = smul.addr %s1445, 8
        %s1447 = scalar_lea.vmem %s2, %s1446
      $region52: #{_conv_block_impl.2} parent=47 // pred_fallthru
        _
      // Predicated region
      $region53: #{_conv_block_impl.2} parent=47 // pred_check
        %p1448 = pneg %p144
      $region54: #{_conv_block_impl.2} parent=47 // pred_check_branch
        %1450 = sbr.rel (%p1448) target = $region56
      $region55: #{_conv_block_impl.2} parent=47 // pred_region
        %p1451 = scmp.lt.s32.totalorder %s23, 3
        %s1452 = scalar_select %p1451, %s23, 3
        %p1453 = scmp.lt.s32.totalorder %s24, 0
        %s1454 = scalar_select %p1453, %s24, 0
        %s1455 = sadd.s32 %s1454, %s1452
        %s1456 = smul.addr %s1455, 8
        %s1457 = scalar_lea.vmem %s3, %s1456
      $region56: #{_conv_block_impl.2} parent=47 // pred_fallthru
        _
    $region48: #{_conv_block_impl.2} parent=5 // pred_fallthru
      _
  $region6: #{_conv_block_impl.2} parent=0 // loop_footer
    %s14 = sadd.s32 1, %s10
  $region7: #{_conv_block_impl.2} parent=0 // loop_footer_branch
    %9 = sbr.rel target = $region3
  $region8: #{_conv_block_impl.2} parent=0 // loop_exit
    _

</llo_original>
